<compile_context>
chip_gen: v7x
topology: tpu7x:2x2x1
jax: 0.10.0
libtpu: 0.0.40
codegen_flags: <defaults>
</compile_context>

<pallas_src>
import jax
import jax.numpy as jnp
from jax.experimental import pallas as pl
from jax.experimental.pallas import tpu as pltpu

LANE = 128
SUBLANE = 8


def _round_up(n, m):
    return ((n + m - 1) // m) * m


def mlp_kernel(x_ref, w1_ref, b1_ref, w2_ref, b2_ref, w3_ref, b3_ref, o_ref):
    # fc1 + ReLU  (hidden dims are lane-padded with zeros once at init, so the
    # padded columns stay exactly zero through ReLU and the next matmul).
    h1 = jnp.dot(x_ref[...], w1_ref[...],
                 preferred_element_type=jnp.float32,
                 precision=jax.lax.Precision.HIGHEST)
    h1 = jnp.maximum(h1 + b1_ref[...], 0.0)
    # fc2 + ReLU
    h2 = jnp.dot(h1, w2_ref[...],
                 preferred_element_type=jnp.float32,
                 precision=jax.lax.Precision.HIGHEST)
    h2 = jnp.maximum(h2 + b2_ref[...], 0.0)
    # out (no activation)
    o = jnp.dot(h2, w3_ref[...],
                preferred_element_type=jnp.float32,
                precision=jax.lax.Precision.HIGHEST)
    o_ref[...] = (o + b3_ref[...]).astype(o_ref.dtype)


def prepare_params(w1, b1, w2, b2, w3, b3):
    """One-time parameter prep: zero-pad hidden feature dims to 128 lanes.

    Done once at init so no pad / dynamic-update-slice ops run per forward
    call. K of fc1 stays in_f (x is unpadded) and N of the last layer stays
    out_f (output is written at its real width).
    """
    in_f, h1_f = w1.shape
    h2_f = w2.shape[1]
    out_f = w3.shape[1]
    h1_p = _round_up(h1_f, LANE)
    h2_p = _round_up(h2_f, LANE)

    w1p = jnp.zeros((in_f, h1_p), w1.dtype).at[:, :h1_f].set(w1)
    b1p = jnp.zeros((1, h1_p), b1.dtype).at[:, :h1_f].set(b1.reshape(1, -1))
    w2p = jnp.zeros((h1_p, h2_p), w2.dtype).at[:h1_f, :h2_f].set(w2)
    b2p = jnp.zeros((1, h2_p), b2.dtype).at[:, :h2_f].set(b2.reshape(1, -1))
    w3p = jnp.zeros((h2_p, out_f), w3.dtype).at[:h2_f, :].set(w3)
    b3p = b3.reshape(1, out_f)
    return w1p, b1p, w2p, b2p, w3p, b3p


def mlp_forward(x, w1p, b1p, w2p, b2p, w3p, b3p, *, block_b=512):
    """Fused MLP forward. Params must come from prepare_params()."""
    B, in_f = x.shape
    out_f = w3p.shape[1]

    # Batch tile: multiple of 8 sublanes. Keep >= 2 grid steps for non-tiny
    # batches so v7x can shard the "parallel" axis across its 2 TensorCores
    # (harmless on v5e/v6e), and size the tile to minimize overhang rows.
    min_steps = 2 if B >= 2 * SUBLANE else 1
    steps = max(pl.cdiv(B, block_b), min_steps)
    tb = _round_up(pl.cdiv(B, steps), SUBLANE)
    grid = (pl.cdiv(B, tb),)

    # x / output tiles follow the batch grid index; weights & biases map to
    # block (0, 0) every step so they are DMA'd once and stay VMEM-resident.
    # Per-step VMEM (tb<=512, f32, double-buffered x/out + resident weights)
    # is well under 2 MiB -> safe on every generation incl. v7x.
    return pl.pallas_call(
        mlp_kernel,
        out_shape=jax.ShapeDtypeStruct((B, out_f), jnp.float32),
        grid_spec=pltpu.PrefetchScalarGridSpec(
            num_scalar_prefetch=0,
            grid=grid,
            in_specs=[
                pl.BlockSpec((tb, in_f), lambda i: (i, 0)),
                pl.BlockSpec(w1p.shape, lambda i: (0, 0)),
                pl.BlockSpec(b1p.shape, lambda i: (0, 0)),
                pl.BlockSpec(w2p.shape, lambda i: (0, 0)),
                pl.BlockSpec(b2p.shape, lambda i: (0, 0)),
                pl.BlockSpec(w3p.shape, lambda i: (0, 0)),
                pl.BlockSpec(b3p.shape, lambda i: (0, 0)),
            ],
            out_specs=pl.BlockSpec((tb, out_f), lambda i: (i, 0)),
        ),
        compiler_params=pltpu.CompilerParams(
            dimension_semantics=("parallel",)),
    )(x, w1p, b1p, w2p, b2p, w3p, b3p)


def init_linear_params(key, fan_in, fan_out):
    # Mimic PyTorch nn.Linear default init: U(-1/sqrt(fan_in), 1/sqrt(fan_in)).
    kw, kb = jax.random.split(key)
    bound = 1.0 / (fan_in ** 0.5)
    w = jax.random.uniform(kw, (fan_in, fan_out), jnp.float32, -bound, bound)
    b = jax.random.uniform(kb, (1, fan_out), jnp.float32, -bound, bound)
    return w, b


def _reference(x, w1, b1, w2, b2, w3, b3):
    hp = jax.lax.Precision.HIGHEST
    r = jnp.maximum(jnp.dot(x, w1, precision=hp) + b1, 0.0)
    r = jnp.maximum(jnp.dot(r, w2, precision=hp) + b2, 0.0)
    return jnp.dot(r, w3, precision=hp) + b3


if __name__ == "__main__":
    in_features, out_features, h1_units, h2_units = 4, 3, 10, 20

    key = jax.random.PRNGKey(0)
    k_x, k_x2, k1, k2, k3 = jax.random.split(key, 5)

    w1, b1 = init_linear_params(k1, in_features, h1_units)
    w2, b2 = init_linear_params(k2, h1_units, h2_units)
    w3, b3 = init_linear_params(k3, h2_units, out_features)

    # One-time parameter prep (hidden-dim padding hoisted out of the call path).
    params = prepare_params(w1, b1, w2, b2, w3, b3)

    # Small batch (matches the module's toy sizes): single grid step.
    x = jax.random.normal(k_x, (8, in_features), jnp.float32)
    out = mlp_forward(x, *params)
    jax.block_until_ready(out)
    ref = _reference(x, w1, b1, w2, b2, w3, b3)
    assert out.shape == (8, out_features)
    assert jnp.allclose(out, ref, atol=1e-5, rtol=1e-5)

    # Larger, non-tile-aligned batch: exercises the multi-step grid and the
    # boundary (overhanging last tile) path.
    x2 = jax.random.normal(k_x2, (200, in_features), jnp.float32)
    out2 = mlp_forward(x2, *params)
    jax.block_until_ready(out2)
    ref2 = _reference(x2, w1, b1, w2, b2, w3, b3)
    assert out2.shape == (200, out_features)
    assert jnp.allclose(out2, ref2, atol=1e-5, rtol=1e-5)

    print("KERNEL_OK")
</pallas_src>

<mosaic_0001>
module attributes {stable_mosaic.version = 11 : i64} {
  func.func @mlp_kernel(%arg0: i32, %arg1: memref<8x4xf32, #tpu.memory_space<vmem>>, %arg2: memref<4x128xf32, #tpu.memory_space<vmem>>, %arg3: memref<1x128xf32, #tpu.memory_space<vmem>>, %arg4: memref<128x128xf32, #tpu.memory_space<vmem>>, %arg5: memref<1x128xf32, #tpu.memory_space<vmem>>, %arg6: memref<128x3xf32, #tpu.memory_space<vmem>>, %arg7: memref<1x3xf32, #tpu.memory_space<vmem>>, %arg8: memref<8x3xf32, #tpu.memory_space<vmem>>) attributes {dimension_semantics = [#tpu.dimension_semantics<parallel>], iteration_bounds = array<i64: 1>, scalar_prefetch = 0 : i64, scratch_operands = 0 : i64, tpu.core_type = #tpu.core_type<tc>, window_params = [{transform_indices = @transform_0, window_bounds = array<i64: 8, 4>}, {pipeline_mode = #tpu.pipeline_mode<synchronous>, transform_indices = @transform_1, window_bounds = array<i64: 4, 128>}, {pipeline_mode = #tpu.pipeline_mode<synchronous>, transform_indices = @transform_2, window_bounds = array<i64: 1, 128>}, {pipeline_mode = #tpu.pipeline_mode<synchronous>, transform_indices = @transform_3, window_bounds = array<i64: 128, 128>}, {pipeline_mode = #tpu.pipeline_mode<synchronous>, transform_indices = @transform_4, window_bounds = array<i64: 1, 128>}, {pipeline_mode = #tpu.pipeline_mode<synchronous>, transform_indices = @transform_5, window_bounds = array<i64: 128, 3>}, {pipeline_mode = #tpu.pipeline_mode<synchronous>, transform_indices = @transform_6, window_bounds = array<i64: 1, 3>}, {transform_indices = @transform_7, window_bounds = array<i64: 8, 3>}]} {
    %c0 = arith.constant 0 : index
    %c0_0 = arith.constant 0 : index
    %0 = vector.load %arg1[%c0, %c0_0] : memref<8x4xf32, #tpu.memory_space<vmem>>, vector<8x4xf32>
    %c0_1 = arith.constant 0 : index
    %c0_2 = arith.constant 0 : index
    %1 = vector.load %arg2[%c0_1, %c0_2] : memref<4x128xf32, #tpu.memory_space<vmem>>, vector<4x128xf32>
    %cst = arith.constant dense<0.000000e+00> : vector<8x128xf32>
    %2 = tpu.matmul %0, %1, %cst {dimension_numbers = #tpu.dot_dimension_numbers<[1], [0], [0], [1], [0, 0, 1, 1], [], []>, precision = #tpu.contract_precision<fp32>} : vector<8x4xf32>, vector<4x128xf32>, vector<8x128xf32> -> vector<8x128xf32>
    %c0_3 = arith.constant 0 : index
    %c0_4 = arith.constant 0 : index
    %3 = vector.load %arg3[%c0_3, %c0_4] : memref<1x128xf32, #tpu.memory_space<vmem>>, vector<1x128xf32>
    %4 = vector.broadcast %3 : vector<1x128xf32> to vector<8x128xf32>
    %5 = arith.addf %2, %4 : vector<8x128xf32>
    %cst_5 = arith.constant 0.000000e+00 : f32
    %6 = vector.broadcast %cst_5 : f32 to vector<8x128xf32>
    %7 = arith.maximumf %5, %6 : vector<8x128xf32>
    %c0_6 = arith.constant 0 : index
    %c0_7 = arith.constant 0 : index
    %8 = vector.load %arg4[%c0_6, %c0_7] : memref<128x128xf32, #tpu.memory_space<vmem>>, vector<128x128xf32>
    %cst_8 = arith.constant dense<0.000000e+00> : vector<8x128xf32>
    %9 = tpu.matmul %7, %8, %cst_8 {dimension_numbers = #tpu.dot_dimension_numbers<[1], [0], [0], [1], [0, 0, 1, 1], [], []>, precision = #tpu.contract_precision<fp32>} : vector<8x128xf32>, vector<128x128xf32>, vector<8x128xf32> -> vector<8x128xf32>
    %c0_9 = arith.constant 0 : index
    %c0_10 = arith.constant 0 : index
    %10 = vector.load %arg5[%c0_9, %c0_10] : memref<1x128xf32, #tpu.memory_space<vmem>>, vector<1x128xf32>
    %11 = vector.broadcast %10 : vector<1x128xf32> to vector<8x128xf32>
    %12 = arith.addf %9, %11 : vector<8x128xf32>
    %cst_11 = arith.constant 0.000000e+00 : f32
    %13 = vector.broadcast %cst_11 : f32 to vector<8x128xf32>
    %14 = arith.maximumf %12, %13 : vector<8x128xf32>
    %c0_12 = arith.constant 0 : index
    %c0_13 = arith.constant 0 : index
    %15 = vector.load %arg6[%c0_12, %c0_13] : memref<128x3xf32, #tpu.memory_space<vmem>>, vector<128x3xf32>
    %cst_14 = arith.constant dense<0.000000e+00> : vector<8x3xf32>
    %16 = tpu.matmul %14, %15, %cst_14 {dimension_numbers = #tpu.dot_dimension_numbers<[1], [0], [0], [1], [0, 0, 1, 1], [], []>, precision = #tpu.contract_precision<fp32>} : vector<8x128xf32>, vector<128x3xf32>, vector<8x3xf32> -> vector<8x3xf32>
    %c0_15 = arith.constant 0 : index
    %c0_16 = arith.constant 0 : index
    %17 = vector.load %arg7[%c0_15, %c0_16] : memref<1x3xf32, #tpu.memory_space<vmem>>, vector<1x3xf32>
    %18 = vector.broadcast %17 : vector<1x3xf32> to vector<8x3xf32>
    %19 = arith.addf %16, %18 : vector<8x3xf32>
    %c0_17 = arith.constant 0 : index
    %c0_18 = arith.constant 0 : index
    %20 = vector.load %arg8[%c0_17, %c0_18] : memref<8x3xf32, #tpu.memory_space<vmem>>, vector<8x3xf32>
    tpu.vector_store %arg8[%c0_17, %c0_18], %19 {strides = array<i32>} : memref<8x3xf32, #tpu.memory_space<vmem>>, vector<8x3xf32>,
    return
  }
  func.func @transform_0(%arg0: i32) -> (i32, i32) {
    %c0_i32 = arith.constant 0 : i32
    %c0_i32_0 = arith.constant 0 : i32
    return %arg0, %c0_i32 : i32, i32
  }
  func.func @transform_1(%arg0: i32) -> (i32, i32) {
    %c0_i32 = arith.constant 0 : i32
    %c0_i32_0 = arith.constant 0 : i32
    %c0_i32_1 = arith.constant 0 : i32
    return %c0_i32, %c0_i32_0 : i32, i32
  }
  func.func @transform_2(%arg0: i32) -> (i32, i32) {
    %c0_i32 = arith.constant 0 : i32
    %c0_i32_0 = arith.constant 0 : i32
    %c0_i32_1 = arith.constant 0 : i32
    return %c0_i32, %c0_i32_0 : i32, i32
  }
  func.func @transform_3(%arg0: i32) -> (i32, i32) {
    %c0_i32 = arith.constant 0 : i32
    %c0_i32_0 = arith.constant 0 : i32
    %c0_i32_1 = arith.constant 0 : i32
    return %c0_i32, %c0_i32_0 : i32, i32
  }
  func.func @transform_4(%arg0: i32) -> (i32, i32) {
    %c0_i32 = arith.constant 0 : i32
    %c0_i32_0 = arith.constant 0 : i32
    %c0_i32_1 = arith.constant 0 : i32
    return %c0_i32, %c0_i32_0 : i32, i32
  }
  func.func @transform_5(%arg0: i32) -> (i32, i32) {
    %c0_i32 = arith.constant 0 : i32
    %c0_i32_0 = arith.constant 0 : i32
    %c0_i32_1 = arith.constant 0 : i32
    return %c0_i32, %c0_i32_0 : i32, i32
  }
  func.func @transform_6(%arg0: i32) -> (i32, i32) {
    %c0_i32 = arith.constant 0 : i32
    %c0_i32_0 = arith.constant 0 : i32
    %c0_i32_1 = arith.constant 0 : i32
    return %c0_i32, %c0_i32_0 : i32, i32
  }
  func.func @transform_7(%arg0: i32) -> (i32, i32) {
    %c0_i32 = arith.constant 0 : i32
    %c0_i32_0 = arith.constant 0 : i32
    return %arg0, %c0_i32 : i32, i32
  }
}

</mosaic_0001>

<llo_original>
// kernel: tpu_custom_call.1
$region0: #{tpu_custom_call.1}
  #allocation0 [shape = 'u32[]', space=smem, size = 0x4, offset = 0x4, fixed_abs, tag = 'smem constant byte address 0x4 - core index']
  #allocation1 [shape = 'u32[144,128]{1,0:T(1,128)}', space=vmem, size = 0x12000, scoped, tag = 'internal scratch']
  %s0 = inlined_call_operand.vmem [shape: f32[8,4], index: 0, kind: input, shape index: {}]
  %s1 = inlined_call_operand.vmem [shape: f32[4,128], index: 1, kind: input, shape index: {}]
  %s2 = inlined_call_operand.vmem [shape: f32[1,128], index: 2, kind: input, shape index: {}]
  %s3 = inlined_call_operand.vmem [shape: f32[128,128], index: 3, kind: input, shape index: {}]
  %s4 = inlined_call_operand.vmem [shape: f32[1,128], index: 4, kind: input, shape index: {}]
  %s5 = inlined_call_operand.vmem [shape: f32[128,3], index: 5, kind: input, shape index: {}]
  %s6 = inlined_call_operand.vmem [shape: f32[1,3], index: 6, kind: input, shape index: {}]
  %s7 = inlined_call_operand.vmem [shape: f32[8,3], index: 7, kind: output, shape index: {}]
  %s8 = sld [smem:[#allocation0]]
  $region38: #{tpu_custom_call.1} parent=0
    _
  %s10 = ssub.s32 1, %s8
  %s11 = scalar_select 0, %s10, %s8
  // Predicated region
  $region2: #{tpu_custom_call.1} parent=0 // pred_check
    _
  $region3: #{tpu_custom_call.1} parent=0 // pred_check_branch
    %13 = sbr.rel (0) target = $region5
  $region4: #{tpu_custom_call.1} parent=0 // pred_region
    _
  $region5: #{tpu_custom_call.1} parent=0 // pred_fallthru
    _
  // Predicated region
  $region6: #{tpu_custom_call.1} parent=0 // pred_check
    _
  $region7: #{tpu_custom_call.1} parent=0 // pred_check_branch
    %15 = sbr.rel (0) target = $region9
  $region8: #{tpu_custom_call.1} parent=0 // pred_region
    _
  $region9: #{tpu_custom_call.1} parent=0 // pred_fallthru
    _
  // Predicated region
  $region10: #{tpu_custom_call.1} parent=0 // pred_check
    _
  $region11: #{tpu_custom_call.1} parent=0 // pred_check_branch
    %17 = sbr.rel (0) target = $region13
  $region12: #{tpu_custom_call.1} parent=0 // pred_region
    _
  $region13: #{tpu_custom_call.1} parent=0 // pred_fallthru
    _
  // Predicated region
  $region14: #{tpu_custom_call.1} parent=0 // pred_check
    _
  $region15: #{tpu_custom_call.1} parent=0 // pred_check_branch
    %19 = sbr.rel (0) target = $region17
  $region16: #{tpu_custom_call.1} parent=0 // pred_region
    _
  $region17: #{tpu_custom_call.1} parent=0 // pred_fallthru
    _
  // Predicated region
  $region18: #{tpu_custom_call.1} parent=0 // pred_check
    _
  $region19: #{tpu_custom_call.1} parent=0 // pred_check_branch
    %21 = sbr.rel (0) target = $region21
  $region20: #{tpu_custom_call.1} parent=0 // pred_region
    _
  $region21: #{tpu_custom_call.1} parent=0 // pred_fallthru
    _
  // Predicated region
  $region22: #{tpu_custom_call.1} parent=0 // pred_check
    _
  $region23: #{tpu_custom_call.1} parent=0 // pred_check_branch
    %23 = sbr.rel (0) target = $region25
  $region24: #{tpu_custom_call.1} parent=0 // pred_region
    _
  $region25: #{tpu_custom_call.1} parent=0 // pred_fallthru
    _
  // Predicated region
  $region26: #{tpu_custom_call.1} parent=0 // pred_check
    _
  $region27: #{tpu_custom_call.1} parent=0 // pred_check_branch
    %25 = sbr.rel (0) target = $region29
  $region28: #{tpu_custom_call.1} parent=0 // pred_region
    _
  $region29: #{tpu_custom_call.1} parent=0 // pred_fallthru
    _
  %v26 = vld [vmem:[%s0] sm:$0xff]
  %v27 = vld [vmem:[%s1] sm:$0xf]
  %v28 = vld [vmem:[%s2] sm:$0x1]
  %v30 = vlaneseq
  %v31 = vshrl.u32 %v30, 7
  %v32 = vsub.s32 0, %v31
  %v33 = vrot.slane %v28, %v32
  %vm35 = vcmask 31744
  %v37 = vsel %vm35, %v26, 0
  %vm39 = vcmask 1043456
  %v41 = vsel %vm39, %v27, 0
  %43 = vmatprep.subr.mxu0 0.0
  %v44 = vand.u32 %v41, 4294901760
  %45 = vmatpush1.msra.mxu0 %v44
  %46 = vmatprep.subr.mxu0 0.0
  %47 = vmatpush1.msra.mxu0 0.0
  %48 = vmatprep.subr.mxu0 0.0
  %49 = vmatpush1.msra.mxu0 0.0
  %50 = vmatprep.subr.mxu0 0.0
  %51 = vmatpush1.msra.mxu0 0.0
  %52 = vmatprep.subr.mxu0 0.0
  %53 = vmatpush1.msra.mxu0 0.0
  %54 = vmatprep.subr.mxu0 0.0
  %55 = vmatpush1.msra.mxu0 0.0
  %56 = vmatprep.subr.mxu0 0.0
  %57 = vmatpush1.msra.mxu0 0.0
  %58 = vmatprep.subr.mxu0 0.0
  %59 = vmatpush1.msra.mxu0 0.0
  %60 = vmatprep.subr.mxu0 0.0
  %61 = vmatpush1.msra.mxu0 0.0
  %62 = vmatprep.subr.mxu0 0.0
  %63 = vmatpush1.msra.mxu0 0.0
  %64 = vmatprep.subr.mxu0 0.0
  %65 = vmatpush1.msra.mxu0 0.0
  %66 = vmatprep.subr.mxu0 0.0
  %67 = vmatpush1.msra.mxu0 0.0
  %68 = vmatprep.subr.mxu0 0.0
  %69 = vmatpush1.msra.mxu0 0.0
  %70 = vmatprep.subr.mxu0 0.0
  %71 = vmatpush1.msra.mxu0 0.0
  %72 = vmatprep.subr.mxu0 0.0
  %73 = vmatpush1.msra.mxu0 0.0
  %74 = vmatprep.subr.mxu0 0.0
  %75 = vmatpush1.msra.mxu0 0.0
  %76 = vmatprep.subr.mxu0 0.0
  %77 = vmatpush1.msra.mxu0 0.0
  %78 = vmatprep.subr.mxu0 0.0
  %79 = vmatpush1.msra.mxu0 0.0
  %80 = vmatprep.subr.mxu0 0.0
  %81 = vmatpush1.msra.mxu0 0.0
  %82 = vmatprep.subr.mxu0 0.0
  %83 = vmatpush1.msra.mxu0 0.0
  %84 = vmatprep.subr.mxu0 0.0
  %85 = vmatpush1.msra.mxu0 0.0
  %86 = vmatprep.subr.mxu0 0.0
  %87 = vmatpush1.msra.mxu0 0.0
  %88 = vmatprep.subr.mxu0 0.0
  %89 = vmatpush1.msra.mxu0 0.0
  %90 = vmatprep.subr.mxu0 0.0
  %91 = vmatpush1.msra.mxu0 0.0
  %92 = vmatprep.subr.mxu0 0.0
  %93 = vmatpush1.msra.mxu0 0.0
  %94 = vmatprep.subr.mxu0 0.0
  %95 = vmatpush1.msra.mxu0 0.0
  %96 = vmatprep.subr.mxu0 0.0
  %97 = vmatpush1.msra.mxu0 0.0
  %98 = vmatprep.subr.mxu0 0.0
  %99 = vmatpush1.msra.mxu0 0.0
  %100 = vmatprep.subr.mxu0 0.0
  %101 = vmatpush1.msra.mxu0 0.0
  %102 = vmatprep.subr.mxu0 0.0
  %103 = vmatpush1.msra.mxu0 0.0
  %104 = vmatprep.subr.mxu0 0.0
  %105 = vmatpush1.msra.mxu0 0.0
  %106 = vmatprep.subr.mxu0 0.0
  %107 = vmatpush1.msra.mxu0 0.0
  %108 = vmatprep.mubr.f32.mxu0 0.0
  %v109 = vand.u32 %v37, 4294901760
  %v110 = vsub.f32 %v37, %v109
  %v111 = vand.u32 %v110, 4294901760
  %v112 = vsub.f32 %v110, %v111
  %v113 = vand.u32 %v112, 4294901760
  %114 = vmatmul.mubr.f32.gmra.mrb[0].mxu0 %v113
  %v115 = vpop.f32.mrb[0].mxu0
  %v116 = vadd.f32 %v33, %v115
  %v117 = vpop.f32.mrb[0].mxu0
  %118 = vdwg.mxu0
  %119 = vmatprep.subr.mxu0 0.0
  %v120 = vand.u32 %v41, 4294901760
  %v121 = vsub.f32 %v41, %v120
  %v122 = vand.u32 %v121, 4294901760
  %v123 = vsub.f32 %v121, %v122
  %v124 = vand.u32 %v123, 4294901760
  %125 = vmatpush1.msra.mxu0 %v124
  %126 = vmatprep.subr.mxu0 0.0
  %127 = vmatpush1.msra.mxu0 0.0
  %128 = vmatprep.subr.mxu0 0.0
  %129 = vmatpush1.msra.mxu0 0.0
  %130 = vmatprep.subr.mxu0 0.0
  %131 = vmatpush1.msra.mxu0 0.0
  %132 = vmatprep.subr.mxu0 0.0
  %133 = vmatpush1.msra.mxu0 0.0
  %134 = vmatprep.subr.mxu0 0.0
  %135 = vmatpush1.msra.mxu0 0.0
  %136 = vmatprep.subr.mxu0 0.0
  %137 = vmatpush1.msra.mxu0 0.0
  %138 = vmatprep.subr.mxu0 0.0
  %139 = vmatpush1.msra.mxu0 0.0
  %140 = vmatprep.subr.mxu0 0.0
  %141 = vmatpush1.msra.mxu0 0.0
  %142 = vmatprep.subr.mxu0 0.0
  %143 = vmatpush1.msra.mxu0 0.0
  %144 = vmatprep.subr.mxu0 0.0
  %145 = vmatpush1.msra.mxu0 0.0
  %146 = vmatprep.subr.mxu0 0.0
  %147 = vmatpush1.msra.mxu0 0.0
  %148 = vmatprep.subr.mxu0 0.0
  %149 = vmatpush1.msra.mxu0 0.0
  %150 = vmatprep.subr.mxu0 0.0
  %151 = vmatpush1.msra.mxu0 0.0
  %152 = vmatprep.subr.mxu0 0.0
  %153 = vmatpush1.msra.mxu0 0.0
  %154 = vmatprep.subr.mxu0 0.0
  %155 = vmatpush1.msra.mxu0 0.0
  %156 = vmatprep.subr.mxu0 0.0
  %157 = vmatpush1.msra.mxu0 0.0
  %158 = vmatprep.subr.mxu0 0.0
  %159 = vmatpush1.msra.mxu0 0.0
  %160 = vmatprep.subr.mxu0 0.0
  %161 = vmatpush1.msra.mxu0 0.0
  %162 = vmatprep.subr.mxu0 0.0
  %163 = vmatpush1.msra.mxu0 0.0
  %164 = vmatprep.subr.mxu0 0.0
  %165 = vmatpush1.msra.mxu0 0.0
  %166 = vmatprep.subr.mxu0 0.0
  %167 = vmatpush1.msra.mxu0 0.0
  %168 = vmatprep.subr.mxu0 0.0
  %169 = vmatpush1.msra.mxu0 0.0
  %170 = vmatprep.subr.mxu0 0.0
  %171 = vmatpush1.msra.mxu0 0.0
  %172 = vmatprep.subr.mxu0 0.0
  %173 = vmatpush1.msra.mxu0 0.0
  %174 = vmatprep.subr.mxu0 0.0
  %175 = vmatpush1.msra.mxu0 0.0
  %176 = vmatprep.subr.mxu0 0.0
  %177 = vmatpush1.msra.mxu0 0.0
  %178 = vmatprep.subr.mxu0 0.0
  %179 = vmatpush1.msra.mxu0 0.0
  %180 = vmatprep.subr.mxu0 0.0
  %181 = vmatpush1.msra.mxu0 0.0
  %182 = vmatprep.subr.mxu0 0.0
  %183 = vmatpush1.msra.mxu0 0.0
  %184 = vmatprep.subr.mxu0 0.0
  %185 = vmatpush1.msra.mxu0 0.0
  %186 = vmatprep.subr.mxu0 0.0
  %187 = vmatpush1.msra.mxu0 0.0
  %188 = vmatprep.mubr.f32.mxu0 0.0
  %v189 = vand.u32 %v37, 4294901760
  %190 = vmatmul.mubr.f32.gmra.mrb[0].mxu0 %v189
  %v191 = vpop.f32.mrb[0].mxu0
  %v192 = vadd.f32 %v116, %v191
  %v193 = vpop.f32.mrb[0].mxu0
  %194 = vdwg.mxu0
  %195 = vmatprep.subr.mxu0 0.0
  %v196 = vand.u32 %v41, 4294901760
  %v197 = vsub.f32 %v41, %v196
  %198 = vmatpush1.msra.mxu0 %v197
  %199 = vmatprep.subr.mxu0 0.0
  %200 = vmatpush1.msra.mxu0 0.0
  %201 = vmatprep.subr.mxu0 0.0
  %202 = vmatpush1.msra.mxu0 0.0
  %203 = vmatprep.subr.mxu0 0.0
  %204 = vmatpush1.msra.mxu0 0.0
  %205 = vmatprep.subr.mxu0 0.0
  %206 = vmatpush1.msra.mxu0 0.0
  %207 = vmatprep.subr.mxu0 0.0
  %208 = vmatpush1.msra.mxu0 0.0
  %209 = vmatprep.subr.mxu0 0.0
  %210 = vmatpush1.msra.mxu0 0.0
  %211 = vmatprep.subr.mxu0 0.0
  %212 = vmatpush1.msra.mxu0 0.0
  %213 = vmatprep.subr.mxu0 0.0
  %214 = vmatpush1.msra.mxu0 0.0
  %215 = vmatprep.subr.mxu0 0.0
  %216 = vmatpush1.msra.mxu0 0.0
  %217 = vmatprep.subr.mxu0 0.0
  %218 = vmatpush1.msra.mxu0 0.0
  %219 = vmatprep.subr.mxu0 0.0
  %220 = vmatpush1.msra.mxu0 0.0
  %221 = vmatprep.subr.mxu0 0.0
  %222 = vmatpush1.msra.mxu0 0.0
  %223 = vmatprep.subr.mxu0 0.0
  %224 = vmatpush1.msra.mxu0 0.0
  %225 = vmatprep.subr.mxu0 0.0
  %226 = vmatpush1.msra.mxu0 0.0
  %227 = vmatprep.subr.mxu0 0.0
  %228 = vmatpush1.msra.mxu0 0.0
  %229 = vmatprep.subr.mxu0 0.0
  %230 = vmatpush1.msra.mxu0 0.0
  %231 = vmatprep.subr.mxu0 0.0
  %232 = vmatpush1.msra.mxu0 0.0
  %233 = vmatprep.subr.mxu0 0.0
  %234 = vmatpush1.msra.mxu0 0.0
  %235 = vmatprep.subr.mxu0 0.0
  %236 = vmatpush1.msra.mxu0 0.0
  %237 = vmatprep.subr.mxu0 0.0
  %238 = vmatpush1.msra.mxu0 0.0
  %239 = vmatprep.subr.mxu0 0.0
  %240 = vmatpush1.msra.mxu0 0.0
  %241 = vmatprep.subr.mxu0 0.0
  %242 = vmatpush1.msra.mxu0 0.0
  %243 = vmatprep.subr.mxu0 0.0
  %244 = vmatpush1.msra.mxu0 0.0
  %245 = vmatprep.subr.mxu0 0.0
  %246 = vmatpush1.msra.mxu0 0.0
  %247 = vmatprep.subr.mxu0 0.0
  %248 = vmatpush1.msra.mxu0 0.0
  %249 = vmatprep.subr.mxu0 0.0
  %250 = vmatpush1.msra.mxu0 0.0
  %251 = vmatprep.subr.mxu0 0.0
  %252 = vmatpush1.msra.mxu0 0.0
  %253 = vmatprep.subr.mxu0 0.0
  %254 = vmatpush1.msra.mxu0 0.0
  %255 = vmatprep.subr.mxu0 0.0
  %256 = vmatpush1.msra.mxu0 0.0
  %257 = vmatprep.subr.mxu0 0.0
  %258 = vmatpush1.msra.mxu0 0.0
  %259 = vmatprep.subr.mxu0 0.0
  %260 = vmatpush1.msra.mxu0 0.0
  %261 = vmatprep.mubr.f32.mxu0 0.0
  %v262 = vand.u32 %v37, 4294901760
  %v263 = vsub.f32 %v37, %v262
  %264 = vmatmul.mubr.f32.gmra.mrb[0].mxu0 %v263
  %v265 = vpop.f32.mrb[0].mxu0
  %v266 = vadd.f32 %v192, %v265
  %v267 = vpop.f32.mrb[0].mxu0
  %268 = vdwg.mxu0
  %269 = vmatprep.subr.mxu0 0.0
  %v270 = vand.u32 %v41, 4294901760
  %271 = vmatpush1.msra.mxu0 %v270
  %272 = vmatprep.subr.mxu0 0.0
  %273 = vmatpush1.msra.mxu0 0.0
  %274 = vmatprep.subr.mxu0 0.0
  %275 = vmatpush1.msra.mxu0 0.0
  %276 = vmatprep.subr.mxu0 0.0
  %277 = vmatpush1.msra.mxu0 0.0
  %278 = vmatprep.subr.mxu0 0.0
  %279 = vmatpush1.msra.mxu0 0.0
  %280 = vmatprep.subr.mxu0 0.0
  %281 = vmatpush1.msra.mxu0 0.0
  %282 = vmatprep.subr.mxu0 0.0
  %283 = vmatpush1.msra.mxu0 0.0
  %284 = vmatprep.subr.mxu0 0.0
  %285 = vmatpush1.msra.mxu0 0.0
  %286 = vmatprep.subr.mxu0 0.0
  %287 = vmatpush1.msra.mxu0 0.0
  %288 = vmatprep.subr.mxu0 0.0
  %289 = vmatpush1.msra.mxu0 0.0
  %290 = vmatprep.subr.mxu0 0.0
  %291 = vmatpush1.msra.mxu0 0.0
  %292 = vmatprep.subr.mxu0 0.0
  %293 = vmatpush1.msra.mxu0 0.0
  %294 = vmatprep.subr.mxu0 0.0
  %295 = vmatpush1.msra.mxu0 0.0
  %296 = vmatprep.subr.mxu0 0.0
  %297 = vmatpush1.msra.mxu0 0.0
  %298 = vmatprep.subr.mxu0 0.0
  %299 = vmatpush1.msra.mxu0 0.0
  %300 = vmatprep.subr.mxu0 0.0
  %301 = vmatpush1.msra.mxu0 0.0
  %302 = vmatprep.subr.mxu0 0.0
  %303 = vmatpush1.msra.mxu0 0.0
  %304 = vmatprep.subr.mxu0 0.0
  %305 = vmatpush1.msra.mxu0 0.0
  %306 = vmatprep.subr.mxu0 0.0
  %307 = vmatpush1.msra.mxu0 0.0
  %308 = vmatprep.subr.mxu0 0.0
  %309 = vmatpush1.msra.mxu0 0.0
  %310 = vmatprep.subr.mxu0 0.0
  %311 = vmatpush1.msra.mxu0 0.0
  %312 = vmatprep.subr.mxu0 0.0
  %313 = vmatpush1.msra.mxu0 0.0
  %314 = vmatprep.subr.mxu0 0.0
  %315 = vmatpush1.msra.mxu0 0.0
  %316 = vmatprep.subr.mxu0 0.0
  %317 = vmatpush1.msra.mxu0 0.0
  %318 = vmatprep.subr.mxu0 0.0
  %319 = vmatpush1.msra.mxu0 0.0
  %320 = vmatprep.subr.mxu0 0.0
  %321 = vmatpush1.msra.mxu0 0.0
  %322 = vmatprep.subr.mxu0 0.0
  %323 = vmatpush1.msra.mxu0 0.0
  %324 = vmatprep.subr.mxu0 0.0
  %325 = vmatpush1.msra.mxu0 0.0
  %326 = vmatprep.subr.mxu0 0.0
  %327 = vmatpush1.msra.mxu0 0.0
  %328 = vmatprep.subr.mxu0 0.0
  %329 = vmatpush1.msra.mxu0 0.0
  %330 = vmatprep.subr.mxu0 0.0
  %331 = vmatpush1.msra.mxu0 0.0
  %332 = vmatprep.subr.mxu0 0.0
  %333 = vmatpush1.msra.mxu0 0.0
  %334 = vmatprep.mubr.f32.mxu0 0.0
  %v335 = vand.u32 %v37, 4294901760
  %v336 = vsub.f32 %v37, %v335
  %v337 = vand.u32 %v336, 4294901760
  %338 = vmatmul.mubr.f32.gmra.mrb[0].mxu0 %v337
  %v339 = vpop.f32.mrb[0].mxu0
  %v340 = vadd.f32 %v266, %v339
  %v341 = vpop.f32.mrb[0].mxu0
  %342 = vdwg.mxu0
  %343 = vmatprep.subr.mxu0 0.0
  %v344 = vand.u32 %v41, 4294901760
  %v345 = vsub.f32 %v41, %v344
  %v346 = vand.u32 %v345, 4294901760
  %347 = vmatpush1.msra.mxu0 %v346
  %348 = vmatprep.subr.mxu0 0.0
  %349 = vmatpush1.msra.mxu0 0.0
  %350 = vmatprep.subr.mxu0 0.0
  %351 = vmatpush1.msra.mxu0 0.0
  %352 = vmatprep.subr.mxu0 0.0
  %353 = vmatpush1.msra.mxu0 0.0
  %354 = vmatprep.subr.mxu0 0.0
  %355 = vmatpush1.msra.mxu0 0.0
  %356 = vmatprep.subr.mxu0 0.0
  %357 = vmatpush1.msra.mxu0 0.0
  %358 = vmatprep.subr.mxu0 0.0
  %359 = vmatpush1.msra.mxu0 0.0
  %360 = vmatprep.subr.mxu0 0.0
  %361 = vmatpush1.msra.mxu0 0.0
  %362 = vmatprep.subr.mxu0 0.0
  %363 = vmatpush1.msra.mxu0 0.0
  %364 = vmatprep.subr.mxu0 0.0
  %365 = vmatpush1.msra.mxu0 0.0
  %366 = vmatprep.subr.mxu0 0.0
  %367 = vmatpush1.msra.mxu0 0.0
  %368 = vmatprep.subr.mxu0 0.0
  %369 = vmatpush1.msra.mxu0 0.0
  %370 = vmatprep.subr.mxu0 0.0
  %371 = vmatpush1.msra.mxu0 0.0
  %372 = vmatprep.subr.mxu0 0.0
  %373 = vmatpush1.msra.mxu0 0.0
  %374 = vmatprep.subr.mxu0 0.0
  %375 = vmatpush1.msra.mxu0 0.0
  %376 = vmatprep.subr.mxu0 0.0
  %377 = vmatpush1.msra.mxu0 0.0
  %378 = vmatprep.subr.mxu0 0.0
  %379 = vmatpush1.msra.mxu0 0.0
  %380 = vmatprep.subr.mxu0 0.0
  %381 = vmatpush1.msra.mxu0 0.0
  %382 = vmatprep.subr.mxu0 0.0
  %383 = vmatpush1.msra.mxu0 0.0
  %384 = vmatprep.subr.mxu0 0.0
  %385 = vmatpush1.msra.mxu0 0.0
  %386 = vmatprep.subr.mxu0 0.0
  %387 = vmatpush1.msra.mxu0 0.0
  %388 = vmatprep.subr.mxu0 0.0
  %389 = vmatpush1.msra.mxu0 0.0
  %390 = vmatprep.subr.mxu0 0.0
  %391 = vmatpush1.msra.mxu0 0.0
  %392 = vmatprep.subr.mxu0 0.0
  %393 = vmatpush1.msra.mxu0 0.0
  %394 = vmatprep.subr.mxu0 0.0
  %395 = vmatpush1.msra.mxu0 0.0
  %396 = vmatprep.subr.mxu0 0.0
  %397 = vmatpush1.msra.mxu0 0.0
  %398 = vmatprep.subr.mxu0 0.0
  %399 = vmatpush1.msra.mxu0 0.0
  %400 = vmatprep.subr.mxu0 0.0
  %401 = vmatpush1.msra.mxu0 0.0
  %402 = vmatprep.subr.mxu0 0.0
  %403 = vmatpush1.msra.mxu0 0.0
  %404 = vmatprep.subr.mxu0 0.0
  %405 = vmatpush1.msra.mxu0 0.0
  %406 = vmatprep.subr.mxu0 0.0
  %407 = vmatpush1.msra.mxu0 0.0
  %408 = vmatprep.subr.mxu0 0.0
  %409 = vmatpush1.msra.mxu0 0.0
  %410 = vmatprep.mubr.f32.mxu0 0.0
  %v411 = vand.u32 %v37, 4294901760
  %412 = vmatmul.mubr.f32.gmra.mrb[0].mxu0 %v411
  %v413 = vpop.f32.mrb[0].mxu0
  %v414 = vadd.f32 %v340, %v413
  %v415 = vpop.f32.mrb[0].mxu0
  %416 = vdwg.mxu0
  %417 = vmatprep.subr.mxu0 0.0
  %v418 = vand.u32 %v41, 4294901760
  %419 = vmatpush1.msra.mxu0 %v418
  %420 = vmatprep.subr.mxu0 0.0
  %421 = vmatpush1.msra.mxu0 0.0
  %422 = vmatprep.subr.mxu0 0.0
  %423 = vmatpush1.msra.mxu0 0.0
  %424 = vmatprep.subr.mxu0 0.0
  %425 = vmatpush1.msra.mxu0 0.0
  %426 = vmatprep.subr.mxu0 0.0
  %427 = vmatpush1.msra.mxu0 0.0
  %428 = vmatprep.subr.mxu0 0.0
  %429 = vmatpush1.msra.mxu0 0.0
  %430 = vmatprep.subr.mxu0 0.0
  %431 = vmatpush1.msra.mxu0 0.0
  %432 = vmatprep.subr.mxu0 0.0
  %433 = vmatpush1.msra.mxu0 0.0
  %434 = vmatprep.subr.mxu0 0.0
  %435 = vmatpush1.msra.mxu0 0.0
  %436 = vmatprep.subr.mxu0 0.0
  %437 = vmatpush1.msra.mxu0 0.0
  %438 = vmatprep.subr.mxu0 0.0
  %439 = vmatpush1.msra.mxu0 0.0
  %440 = vmatprep.subr.mxu0 0.0
  %441 = vmatpush1.msra.mxu0 0.0
  %442 = vmatprep.subr.mxu0 0.0
  %443 = vmatpush1.msra.mxu0 0.0
  %444 = vmatprep.subr.mxu0 0.0
  %445 = vmatpush1.msra.mxu0 0.0
  %446 = vmatprep.subr.mxu0 0.0
  %447 = vmatpush1.msra.mxu0 0.0
  %448 = vmatprep.subr.mxu0 0.0
  %449 = vmatpush1.msra.mxu0 0.0
  %450 = vmatprep.subr.mxu0 0.0
  %451 = vmatpush1.msra.mxu0 0.0
  %452 = vmatprep.subr.mxu0 0.0
  %453 = vmatpush1.msra.mxu0 0.0
  %454 = vmatprep.subr.mxu0 0.0
  %455 = vmatpush1.msra.mxu0 0.0
  %456 = vmatprep.subr.mxu0 0.0
  %457 = vmatpush1.msra.mxu0 0.0
  %458 = vmatprep.subr.mxu0 0.0
  %459 = vmatpush1.msra.mxu0 0.0
  %460 = vmatprep.subr.mxu0 0.0
  %461 = vmatpush1.msra.mxu0 0.0
  %462 = vmatprep.subr.mxu0 0.0
  %463 = vmatpush1.msra.mxu0 0.0
  %464 = vmatprep.subr.mxu0 0.0
  %465 = vmatpush1.msra.mxu0 0.0
  %466 = vmatprep.subr.mxu0 0.0
  %467 = vmatpush1.msra.mxu0 0.0
  %468 = vmatprep.subr.mxu0 0.0
  %469 = vmatpush1.msra.mxu0 0.0
  %470 = vmatprep.subr.mxu0 0.0
  %471 = vmatpush1.msra.mxu0 0.0
  %472 = vmatprep.subr.mxu0 0.0
  %473 = vmatpush1.msra.mxu0 0.0
  %474 = vmatprep.subr.mxu0 0.0
  %475 = vmatpush1.msra.mxu0 0.0
  %476 = vmatprep.subr.mxu0 0.0
  %477 = vmatpush1.msra.mxu0 0.0
  %478 = vmatprep.subr.mxu0 0.0
  %479 = vmatpush1.msra.mxu0 0.0
  %480 = vmatprep.subr.mxu0 0.0
  %481 = vmatpush1.msra.mxu0 0.0
  %482 = vmatprep.mubr.f32.mxu0 0.0
  %v483 = vand.u32 %v37, 4294901760
  %484 = vmatmul.mubr.f32.gmra.mrb[0].mxu0 %v483
  %v485 = vpop.f32.mrb[0].mxu0
  %v486 = vadd.f32 %v414, %v485
  %v487 = vpop.f32.mrb[0].mxu0
  %488 = vdwg.mxu0
  %v489 = vmax.f32 %v486, 0.0
  %v490 = vld [vmem:[%s3] sm:$0xff]
  %v491 = vld [vmem:[%s3 + $0x8] sm:$0xff]
  %v492 = vld [vmem:[%s3 + $0x10] sm:$0xff]
  %v493 = vld [vmem:[%s3 + $0x18] sm:$0xff]
  %v494 = vld [vmem:[%s3 + $0x20] sm:$0xff]
  %v495 = vld [vmem:[%s3 + $0x28] sm:$0xff]
  %v496 = vld [vmem:[%s3 + $0x30] sm:$0xff]
  %v497 = vld [vmem:[%s3 + $0x38] sm:$0xff]
  %v498 = vld [vmem:[%s3 + $0x40] sm:$0xff]
  %v499 = vld [vmem:[%s3 + $0x48] sm:$0xff]
  %v500 = vld [vmem:[%s3 + $0x50] sm:$0xff]
  %v501 = vld [vmem:[%s3 + $0x58] sm:$0xff]
  %v502 = vld [vmem:[%s3 + $0x60] sm:$0xff]
  %v503 = vld [vmem:[%s3 + $0x68] sm:$0xff]
  %v504 = vld [vmem:[%s3 + $0x70] sm:$0xff]
  %v505 = vld [vmem:[%s3 + $0x78] sm:$0xff]
  %v506 = vld [vmem:[%s4] sm:$0x1]
  %v508 = vlaneseq
  %v509 = vshrl.u32 %v508, 7
  %v510 = vsub.s32 0, %v509
  %v511 = vrot.slane %v506, %v510
  %513 = vmatprep.subr.mxu0 0.0
  %v514 = vand.u32 %v490, 4294901760
  %515 = vmatpush1.msra.mxu0 %v514
  %516 = vmatprep.subr.mxu0 0.0
  %v517 = vand.u32 %v491, 4294901760
  %518 = vmatpush1.msra.mxu0 %v517
  %519 = vmatprep.subr.mxu0 0.0
  %v520 = vand.u32 %v492, 4294901760
  %521 = vmatpush1.msra.mxu0 %v520
  %522 = vmatprep.subr.mxu0 0.0
  %v523 = vand.u32 %v493, 4294901760
  %524 = vmatpush1.msra.mxu0 %v523
  %525 = vmatprep.subr.mxu0 0.0
  %v526 = vand.u32 %v494, 4294901760
  %527 = vmatpush1.msra.mxu0 %v526
  %528 = vmatprep.subr.mxu0 0.0
  %v529 = vand.u32 %v495, 4294901760
  %530 = vmatpush1.msra.mxu0 %v529
  %531 = vmatprep.subr.mxu0 0.0
  %v532 = vand.u32 %v496, 4294901760
  %533 = vmatpush1.msra.mxu0 %v532
  %534 = vmatprep.subr.mxu0 0.0
  %v535 = vand.u32 %v497, 4294901760
  %536 = vmatpush1.msra.mxu0 %v535
  %537 = vmatprep.subr.mxu0 0.0
  %v538 = vand.u32 %v498, 4294901760
  %539 = vmatpush1.msra.mxu0 %v538
  %540 = vmatprep.subr.mxu0 0.0
  %v541 = vand.u32 %v499, 4294901760
  %542 = vmatpush1.msra.mxu0 %v541
  %543 = vmatprep.subr.mxu0 0.0
  %v544 = vand.u32 %v500, 4294901760
  %545 = vmatpush1.msra.mxu0 %v544
  %546 = vmatprep.subr.mxu0 0.0
  %v547 = vand.u32 %v501, 4294901760
  %548 = vmatpush1.msra.mxu0 %v547
  %549 = vmatprep.subr.mxu0 0.0
  %v550 = vand.u32 %v502, 4294901760
  %551 = vmatpush1.msra.mxu0 %v550
  %552 = vmatprep.subr.mxu0 0.0
  %v553 = vand.u32 %v503, 4294901760
  %554 = vmatpush1.msra.mxu0 %v553
  %555 = vmatprep.subr.mxu0 0.0
  %v556 = vand.u32 %v504, 4294901760
  %557 = vmatpush1.msra.mxu0 %v556
  %558 = vmatprep.subr.mxu0 0.0
  %v559 = vand.u32 %v505, 4294901760
  %560 = vmatpush1.msra.mxu0 %v559
  %561 = vmatprep.subr.mxu0 0.0
  %562 = vmatpush1.msra.mxu0 0.0
  %563 = vmatprep.subr.mxu0 0.0
  %564 = vmatpush1.msra.mxu0 0.0
  %565 = vmatprep.subr.mxu0 0.0
  %566 = vmatpush1.msra.mxu0 0.0
  %567 = vmatprep.subr.mxu0 0.0
  %568 = vmatpush1.msra.mxu0 0.0
  %569 = vmatprep.subr.mxu0 0.0
  %570 = vmatpush1.msra.mxu0 0.0
  %571 = vmatprep.subr.mxu0 0.0
  %572 = vmatpush1.msra.mxu0 0.0
  %573 = vmatprep.subr.mxu0 0.0
  %574 = vmatpush1.msra.mxu0 0.0
  %575 = vmatprep.subr.mxu0 0.0
  %576 = vmatpush1.msra.mxu0 0.0
  %577 = vmatprep.subr.mxu0 0.0
  %578 = vmatpush1.msra.mxu0 0.0
  %579 = vmatprep.subr.mxu0 0.0
  %580 = vmatpush1.msra.mxu0 0.0
  %581 = vmatprep.subr.mxu0 0.0
  %582 = vmatpush1.msra.mxu0 0.0
  %583 = vmatprep.subr.mxu0 0.0
  %584 = vmatpush1.msra.mxu0 0.0
  %585 = vmatprep.subr.mxu0 0.0
  %586 = vmatpush1.msra.mxu0 0.0
  %587 = vmatprep.subr.mxu0 0.0
  %588 = vmatpush1.msra.mxu0 0.0
  %589 = vmatprep.subr.mxu0 0.0
  %590 = vmatpush1.msra.mxu0 0.0
  %591 = vmatprep.subr.mxu0 0.0
  %592 = vmatpush1.msra.mxu0 0.0
  %593 = vmatprep.mubr.f32.mxu0 0.0
  %v594 = vand.u32 %v489, 4294901760
  %v595 = vsub.f32 %v489, %v594
  %v596 = vand.u32 %v595, 4294901760
  %v597 = vsub.f32 %v595, %v596
  %v598 = vand.u32 %v597, 4294901760
  %599 = vmatmul.mubr.f32.gmra.mrb[0].mxu0 %v598
  %v600 = vpop.f32.mrb[0].mxu0
  %v601 = vadd.f32 %v511, %v600
  %v602 = vpop.f32.mrb[0].mxu0
  %603 = vdwg.mxu0
  %604 = vmatprep.subr.mxu0 0.0
  %v605 = vand.u32 %v490, 4294901760
  %v606 = vsub.f32 %v490, %v605
  %v607 = vand.u32 %v606, 4294901760
  %v608 = vsub.f32 %v606, %v607
  %v609 = vand.u32 %v608, 4294901760
  %610 = vmatpush1.msra.mxu0 %v609
  %611 = vmatprep.subr.mxu0 0.0
  %v612 = vand.u32 %v491, 4294901760
  %v613 = vsub.f32 %v491, %v612
  %v614 = vand.u32 %v613, 4294901760
  %v615 = vsub.f32 %v613, %v614
  %v616 = vand.u32 %v615, 4294901760
  %617 = vmatpush1.msra.mxu0 %v616
  %618 = vmatprep.subr.mxu0 0.0
  %v619 = vand.u32 %v492, 4294901760
  %v620 = vsub.f32 %v492, %v619
  %v621 = vand.u32 %v620, 4294901760
  %v622 = vsub.f32 %v620, %v621
  %v623 = vand.u32 %v622, 4294901760
  %624 = vmatpush1.msra.mxu0 %v623
  %625 = vmatprep.subr.mxu0 0.0
  %v626 = vand.u32 %v493, 4294901760
  %v627 = vsub.f32 %v493, %v626
  %v628 = vand.u32 %v627, 4294901760
  %v629 = vsub.f32 %v627, %v628
  %v630 = vand.u32 %v629, 4294901760
  %631 = vmatpush1.msra.mxu0 %v630
  %632 = vmatprep.subr.mxu0 0.0
  %v633 = vand.u32 %v494, 4294901760
  %v634 = vsub.f32 %v494, %v633
  %v635 = vand.u32 %v634, 4294901760
  %v636 = vsub.f32 %v634, %v635
  %v637 = vand.u32 %v636, 4294901760
  %638 = vmatpush1.msra.mxu0 %v637
  %639 = vmatprep.subr.mxu0 0.0
  %v640 = vand.u32 %v495, 4294901760
  %v641 = vsub.f32 %v495, %v640
  %v642 = vand.u32 %v641, 4294901760
  %v643 = vsub.f32 %v641, %v642
  %v644 = vand.u32 %v643, 4294901760
  %645 = vmatpush1.msra.mxu0 %v644
  %646 = vmatprep.subr.mxu0 0.0
  %v647 = vand.u32 %v496, 4294901760
  %v648 = vsub.f32 %v496, %v647
  %v649 = vand.u32 %v648, 4294901760
  %v650 = vsub.f32 %v648, %v649
  %v651 = vand.u32 %v650, 4294901760
  %652 = vmatpush1.msra.mxu0 %v651
  %653 = vmatprep.subr.mxu0 0.0
  %v654 = vand.u32 %v497, 4294901760
  %v655 = vsub.f32 %v497, %v654
  %v656 = vand.u32 %v655, 4294901760
  %v657 = vsub.f32 %v655, %v656
  %v658 = vand.u32 %v657, 4294901760
  %659 = vmatpush1.msra.mxu0 %v658
  %660 = vmatprep.subr.mxu0 0.0
  %v661 = vand.u32 %v498, 4294901760
  %v662 = vsub.f32 %v498, %v661
  %v663 = vand.u32 %v662, 4294901760
  %v664 = vsub.f32 %v662, %v663
  %v665 = vand.u32 %v664, 4294901760
  %666 = vmatpush1.msra.mxu0 %v665
  %667 = vmatprep.subr.mxu0 0.0
  %v668 = vand.u32 %v499, 4294901760
  %v669 = vsub.f32 %v499, %v668
  %v670 = vand.u32 %v669, 4294901760
  %v671 = vsub.f32 %v669, %v670
  %v672 = vand.u32 %v671, 4294901760
  %673 = vmatpush1.msra.mxu0 %v672
  %674 = vmatprep.subr.mxu0 0.0
  %v675 = vand.u32 %v500, 4294901760
  %v676 = vsub.f32 %v500, %v675
  %v677 = vand.u32 %v676, 4294901760
  %v678 = vsub.f32 %v676, %v677
  %v679 = vand.u32 %v678, 4294901760
  %680 = vmatpush1.msra.mxu0 %v679
  %681 = vmatprep.subr.mxu0 0.0
  %v682 = vand.u32 %v501, 4294901760
  %v683 = vsub.f32 %v501, %v682
  %v684 = vand.u32 %v683, 4294901760
  %v685 = vsub.f32 %v683, %v684
  %v686 = vand.u32 %v685, 4294901760
  %687 = vmatpush1.msra.mxu0 %v686
  %688 = vmatprep.subr.mxu0 0.0
  %v689 = vand.u32 %v502, 4294901760
  %v690 = vsub.f32 %v502, %v689
  %v691 = vand.u32 %v690, 4294901760
  %v692 = vsub.f32 %v690, %v691
  %v693 = vand.u32 %v692, 4294901760
  %694 = vmatpush1.msra.mxu0 %v693
  %695 = vmatprep.subr.mxu0 0.0
  %v696 = vand.u32 %v503, 4294901760
  %v697 = vsub.f32 %v503, %v696
  %v698 = vand.u32 %v697, 4294901760
  %v699 = vsub.f32 %v697, %v698
  %v700 = vand.u32 %v699, 4294901760
  %701 = vmatpush1.msra.mxu0 %v700
  %702 = vmatprep.subr.mxu0 0.0
  %v703 = vand.u32 %v504, 4294901760
  %v704 = vsub.f32 %v504, %v703
  %v705 = vand.u32 %v704, 4294901760
  %v706 = vsub.f32 %v704, %v705
  %v707 = vand.u32 %v706, 4294901760
  %708 = vmatpush1.msra.mxu0 %v707
  %709 = vmatprep.subr.mxu0 0.0
  %v710 = vand.u32 %v505, 4294901760
  %v711 = vsub.f32 %v505, %v710
  %v712 = vand.u32 %v711, 4294901760
  %v713 = vsub.f32 %v711, %v712
  %v714 = vand.u32 %v713, 4294901760
  %715 = vmatpush1.msra.mxu0 %v714
  %716 = vmatprep.subr.mxu0 0.0
  %717 = vmatpush1.msra.mxu0 0.0
  %718 = vmatprep.subr.mxu0 0.0
  %719 = vmatpush1.msra.mxu0 0.0
  %720 = vmatprep.subr.mxu0 0.0
  %721 = vmatpush1.msra.mxu0 0.0
  %722 = vmatprep.subr.mxu0 0.0
  %723 = vmatpush1.msra.mxu0 0.0
  %724 = vmatprep.subr.mxu0 0.0
  %725 = vmatpush1.msra.mxu0 0.0
  %726 = vmatprep.subr.mxu0 0.0
  %727 = vmatpush1.msra.mxu0 0.0
  %728 = vmatprep.subr.mxu0 0.0
  %729 = vmatpush1.msra.mxu0 0.0
  %730 = vmatprep.subr.mxu0 0.0
  %731 = vmatpush1.msra.mxu0 0.0
  %732 = vmatprep.subr.mxu0 0.0
  %733 = vmatpush1.msra.mxu0 0.0
  %734 = vmatprep.subr.mxu0 0.0
  %735 = vmatpush1.msra.mxu0 0.0
  %736 = vmatprep.subr.mxu0 0.0
  %737 = vmatpush1.msra.mxu0 0.0
  %738 = vmatprep.subr.mxu0 0.0
  %739 = vmatpush1.msra.mxu0 0.0
  %740 = vmatprep.subr.mxu0 0.0
  %741 = vmatpush1.msra.mxu0 0.0
  %742 = vmatprep.subr.mxu0 0.0
  %743 = vmatpush1.msra.mxu0 0.0
  %744 = vmatprep.subr.mxu0 0.0
  %745 = vmatpush1.msra.mxu0 0.0
  %746 = vmatprep.subr.mxu0 0.0
  %747 = vmatpush1.msra.mxu0 0.0
  %748 = vmatprep.mubr.f32.mxu0 0.0
  %v749 = vand.u32 %v489, 4294901760
  %750 = vmatmul.mubr.f32.gmra.mrb[0].mxu0 %v749
  %v751 = vpop.f32.mrb[0].mxu0
  %v752 = vadd.f32 %v601, %v751
  %v753 = vpop.f32.mrb[0].mxu0
  %754 = vdwg.mxu0
  %755 = vmatprep.subr.mxu0 0.0
  %v756 = vand.u32 %v490, 4294901760
  %v757 = vsub.f32 %v490, %v756
  %758 = vmatpush1.msra.mxu0 %v757
  %759 = vmatprep.subr.mxu0 0.0
  %v760 = vand.u32 %v491, 4294901760
  %v761 = vsub.f32 %v491, %v760
  %762 = vmatpush1.msra.mxu0 %v761
  %763 = vmatprep.subr.mxu0 0.0
  %v764 = vand.u32 %v492, 4294901760
  %v765 = vsub.f32 %v492, %v764
  %766 = vmatpush1.msra.mxu0 %v765
  %767 = vmatprep.subr.mxu0 0.0
  %v768 = vand.u32 %v493, 4294901760
  %v769 = vsub.f32 %v493, %v768
  %770 = vmatpush1.msra.mxu0 %v769
  %771 = vmatprep.subr.mxu0 0.0
  %v772 = vand.u32 %v494, 4294901760
  %v773 = vsub.f32 %v494, %v772
  %774 = vmatpush1.msra.mxu0 %v773
  %775 = vmatprep.subr.mxu0 0.0
  %v776 = vand.u32 %v495, 4294901760
  %v777 = vsub.f32 %v495, %v776
  %778 = vmatpush1.msra.mxu0 %v777
  %779 = vmatprep.subr.mxu0 0.0
  %v780 = vand.u32 %v496, 4294901760
  %v781 = vsub.f32 %v496, %v780
  %782 = vmatpush1.msra.mxu0 %v781
  %783 = vmatprep.subr.mxu0 0.0
  %v784 = vand.u32 %v497, 4294901760
  %v785 = vsub.f32 %v497, %v784
  %786 = vmatpush1.msra.mxu0 %v785
  %787 = vmatprep.subr.mxu0 0.0
  %v788 = vand.u32 %v498, 4294901760
  %v789 = vsub.f32 %v498, %v788
  %790 = vmatpush1.msra.mxu0 %v789
  %791 = vmatprep.subr.mxu0 0.0
  %v792 = vand.u32 %v499, 4294901760
  %v793 = vsub.f32 %v499, %v792
  %794 = vmatpush1.msra.mxu0 %v793
  %795 = vmatprep.subr.mxu0 0.0
  %v796 = vand.u32 %v500, 4294901760
  %v797 = vsub.f32 %v500, %v796
  %798 = vmatpush1.msra.mxu0 %v797
  %799 = vmatprep.subr.mxu0 0.0
  %v800 = vand.u32 %v501, 4294901760
  %v801 = vsub.f32 %v501, %v800
  %802 = vmatpush1.msra.mxu0 %v801
  %803 = vmatprep.subr.mxu0 0.0
  %v804 = vand.u32 %v502, 4294901760
  %v805 = vsub.f32 %v502, %v804
  %806 = vmatpush1.msra.mxu0 %v805
  %807 = vmatprep.subr.mxu0 0.0
  %v808 = vand.u32 %v503, 4294901760
  %v809 = vsub.f32 %v503, %v808
  %810 = vmatpush1.msra.mxu0 %v809
  %811 = vmatprep.subr.mxu0 0.0
  %v812 = vand.u32 %v504, 4294901760
  %v813 = vsub.f32 %v504, %v812
  %814 = vmatpush1.msra.mxu0 %v813
  %815 = vmatprep.subr.mxu0 0.0
  %v816 = vand.u32 %v505, 4294901760
  %v817 = vsub.f32 %v505, %v816
  %818 = vmatpush1.msra.mxu0 %v817
  %819 = vmatprep.subr.mxu0 0.0
  %820 = vmatpush1.msra.mxu0 0.0
  %821 = vmatprep.subr.mxu0 0.0
  %822 = vmatpush1.msra.mxu0 0.0
  %823 = vmatprep.subr.mxu0 0.0
  %824 = vmatpush1.msra.mxu0 0.0
  %825 = vmatprep.subr.mxu0 0.0
  %826 = vmatpush1.msra.mxu0 0.0
  %827 = vmatprep.subr.mxu0 0.0
  %828 = vmatpush1.msra.mxu0 0.0
  %829 = vmatprep.subr.mxu0 0.0
  %830 = vmatpush1.msra.mxu0 0.0
  %831 = vmatprep.subr.mxu0 0.0
  %832 = vmatpush1.msra.mxu0 0.0
  %833 = vmatprep.subr.mxu0 0.0
  %834 = vmatpush1.msra.mxu0 0.0
  %835 = vmatprep.subr.mxu0 0.0
  %836 = vmatpush1.msra.mxu0 0.0
  %837 = vmatprep.subr.mxu0 0.0
  %838 = vmatpush1.msra.mxu0 0.0
  %839 = vmatprep.subr.mxu0 0.0
  %840 = vmatpush1.msra.mxu0 0.0
  %841 = vmatprep.subr.mxu0 0.0
  %842 = vmatpush1.msra.mxu0 0.0
  %843 = vmatprep.subr.mxu0 0.0
  %844 = vmatpush1.msra.mxu0 0.0
  %845 = vmatprep.subr.mxu0 0.0
  %846 = vmatpush1.msra.mxu0 0.0
  %847 = vmatprep.subr.mxu0 0.0
  %848 = vmatpush1.msra.mxu0 0.0
  %849 = vmatprep.subr.mxu0 0.0
  %850 = vmatpush1.msra.mxu0 0.0
  %851 = vmatprep.mubr.f32.mxu0 0.0
  %v852 = vand.u32 %v489, 4294901760
  %v853 = vsub.f32 %v489, %v852
  %854 = vmatmul.mubr.f32.gmra.mrb[0].mxu0 %v853
  %v855 = vpop.f32.mrb[0].mxu0
  %v856 = vadd.f32 %v752, %v855
  %v857 = vpop.f32.mrb[0].mxu0
  %858 = vdwg.mxu0
  %859 = vmatprep.subr.mxu0 0.0
  %v860 = vand.u32 %v490, 4294901760
  %861 = vmatpush1.msra.mxu0 %v860
  %862 = vmatprep.subr.mxu0 0.0
  %v863 = vand.u32 %v491, 4294901760
  %864 = vmatpush1.msra.mxu0 %v863
  %865 = vmatprep.subr.mxu0 0.0
  %v866 = vand.u32 %v492, 4294901760
  %867 = vmatpush1.msra.mxu0 %v866
  %868 = vmatprep.subr.mxu0 0.0
  %v869 = vand.u32 %v493, 4294901760
  %870 = vmatpush1.msra.mxu0 %v869
  %871 = vmatprep.subr.mxu0 0.0
  %v872 = vand.u32 %v494, 4294901760
  %873 = vmatpush1.msra.mxu0 %v872
  %874 = vmatprep.subr.mxu0 0.0
  %v875 = vand.u32 %v495, 4294901760
  %876 = vmatpush1.msra.mxu0 %v875
  %877 = vmatprep.subr.mxu0 0.0
  %v878 = vand.u32 %v496, 4294901760
  %879 = vmatpush1.msra.mxu0 %v878
  %880 = vmatprep.subr.mxu0 0.0
  %v881 = vand.u32 %v497, 4294901760
  %882 = vmatpush1.msra.mxu0 %v881
  %883 = vmatprep.subr.mxu0 0.0
  %v884 = vand.u32 %v498, 4294901760
  %885 = vmatpush1.msra.mxu0 %v884
  %886 = vmatprep.subr.mxu0 0.0
  %v887 = vand.u32 %v499, 4294901760
  %888 = vmatpush1.msra.mxu0 %v887
  %889 = vmatprep.subr.mxu0 0.0
  %v890 = vand.u32 %v500, 4294901760
  %891 = vmatpush1.msra.mxu0 %v890
  %892 = vmatprep.subr.mxu0 0.0
  %v893 = vand.u32 %v501, 4294901760
  %894 = vmatpush1.msra.mxu0 %v893
  %895 = vmatprep.subr.mxu0 0.0
  %v896 = vand.u32 %v502, 4294901760
  %897 = vmatpush1.msra.mxu0 %v896
  %898 = vmatprep.subr.mxu0 0.0
  %v899 = vand.u32 %v503, 4294901760
  %900 = vmatpush1.msra.mxu0 %v899
  %901 = vmatprep.subr.mxu0 0.0
  %v902 = vand.u32 %v504, 4294901760
  %903 = vmatpush1.msra.mxu0 %v902
  %904 = vmatprep.subr.mxu0 0.0
  %v905 = vand.u32 %v505, 4294901760
  %906 = vmatpush1.msra.mxu0 %v905
  %907 = vmatprep.subr.mxu0 0.0
  %908 = vmatpush1.msra.mxu0 0.0
  %909 = vmatprep.subr.mxu0 0.0
  %910 = vmatpush1.msra.mxu0 0.0
  %911 = vmatprep.subr.mxu0 0.0
  %912 = vmatpush1.msra.mxu0 0.0
  %913 = vmatprep.subr.mxu0 0.0
  %914 = vmatpush1.msra.mxu0 0.0
  %915 = vmatprep.subr.mxu0 0.0
  %916 = vmatpush1.msra.mxu0 0.0
  %917 = vmatprep.subr.mxu0 0.0
  %918 = vmatpush1.msra.mxu0 0.0
  %919 = vmatprep.subr.mxu0 0.0
  %920 = vmatpush1.msra.mxu0 0.0
  %921 = vmatprep.subr.mxu0 0.0
  %922 = vmatpush1.msra.mxu0 0.0
  %923 = vmatprep.subr.mxu0 0.0
  %924 = vmatpush1.msra.mxu0 0.0
  %925 = vmatprep.subr.mxu0 0.0
  %926 = vmatpush1.msra.mxu0 0.0
  %927 = vmatprep.subr.mxu0 0.0
  %928 = vmatpush1.msra.mxu0 0.0
  %929 = vmatprep.subr.mxu0 0.0
  %930 = vmatpush1.msra.mxu0 0.0
  %931 = vmatprep.subr.mxu0 0.0
  %932 = vmatpush1.msra.mxu0 0.0
  %933 = vmatprep.subr.mxu0 0.0
  %934 = vmatpush1.msra.mxu0 0.0
  %935 = vmatprep.subr.mxu0 0.0
  %936 = vmatpush1.msra.mxu0 0.0
  %937 = vmatprep.subr.mxu0 0.0
  %938 = vmatpush1.msra.mxu0 0.0
  %939 = vmatprep.mubr.f32.mxu0 0.0
  %v940 = vand.u32 %v489, 4294901760
  %v941 = vsub.f32 %v489, %v940
  %v942 = vand.u32 %v941, 4294901760
  %943 = vmatmul.mubr.f32.gmra.mrb[0].mxu0 %v942
  %v944 = vpop.f32.mrb[0].mxu0
  %v945 = vadd.f32 %v856, %v944
  %v946 = vpop.f32.mrb[0].mxu0
  %947 = vdwg.mxu0
  %948 = vmatprep.subr.mxu0 0.0
  %v949 = vand.u32 %v490, 4294901760
  %v950 = vsub.f32 %v490, %v949
  %v951 = vand.u32 %v950, 4294901760
  %952 = vmatpush1.msra.mxu0 %v951
  %953 = vmatprep.subr.mxu0 0.0
  %v954 = vand.u32 %v491, 4294901760
  %v955 = vsub.f32 %v491, %v954
  %v956 = vand.u32 %v955, 4294901760
  %957 = vmatpush1.msra.mxu0 %v956
  %958 = vmatprep.subr.mxu0 0.0
  %v959 = vand.u32 %v492, 4294901760
  %v960 = vsub.f32 %v492, %v959
  %v961 = vand.u32 %v960, 4294901760
  %962 = vmatpush1.msra.mxu0 %v961
  %963 = vmatprep.subr.mxu0 0.0
  %v964 = vand.u32 %v493, 4294901760
  %v965 = vsub.f32 %v493, %v964
  %v966 = vand.u32 %v965, 4294901760
  %967 = vmatpush1.msra.mxu0 %v966
  %968 = vmatprep.subr.mxu0 0.0
  %v969 = vand.u32 %v494, 4294901760
  %v970 = vsub.f32 %v494, %v969
  %v971 = vand.u32 %v970, 4294901760
  %972 = vmatpush1.msra.mxu0 %v971
  %973 = vmatprep.subr.mxu0 0.0
  %v974 = vand.u32 %v495, 4294901760
  %v975 = vsub.f32 %v495, %v974
  %v976 = vand.u32 %v975, 4294901760
  %977 = vmatpush1.msra.mxu0 %v976
  %978 = vmatprep.subr.mxu0 0.0
  %v979 = vand.u32 %v496, 4294901760
  %v980 = vsub.f32 %v496, %v979
  %v981 = vand.u32 %v980, 4294901760
  %982 = vmatpush1.msra.mxu0 %v981
  %983 = vmatprep.subr.mxu0 0.0
  %v984 = vand.u32 %v497, 4294901760
  %v985 = vsub.f32 %v497, %v984
  %v986 = vand.u32 %v985, 4294901760
  %987 = vmatpush1.msra.mxu0 %v986
  %988 = vmatprep.subr.mxu0 0.0
  %v989 = vand.u32 %v498, 4294901760
  %v990 = vsub.f32 %v498, %v989
  %v991 = vand.u32 %v990, 4294901760
  %992 = vmatpush1.msra.mxu0 %v991
  %993 = vmatprep.subr.mxu0 0.0
  %v994 = vand.u32 %v499, 4294901760
  %v995 = vsub.f32 %v499, %v994
  %v996 = vand.u32 %v995, 4294901760
  %997 = vmatpush1.msra.mxu0 %v996
  %998 = vmatprep.subr.mxu0 0.0
  %v999 = vand.u32 %v500, 4294901760
  %v1000 = vsub.f32 %v500, %v999
  %v1001 = vand.u32 %v1000, 4294901760
  %1002 = vmatpush1.msra.mxu0 %v1001
  %1003 = vmatprep.subr.mxu0 0.0
  %v1004 = vand.u32 %v501, 4294901760
  %v1005 = vsub.f32 %v501, %v1004
  %v1006 = vand.u32 %v1005, 4294901760
  %1007 = vmatpush1.msra.mxu0 %v1006
  %1008 = vmatprep.subr.mxu0 0.0
  %v1009 = vand.u32 %v502, 4294901760
  %v1010 = vsub.f32 %v502, %v1009
  %v1011 = vand.u32 %v1010, 4294901760
  %1012 = vmatpush1.msra.mxu0 %v1011
  %1013 = vmatprep.subr.mxu0 0.0
  %v1014 = vand.u32 %v503, 4294901760
  %v1015 = vsub.f32 %v503, %v1014
  %v1016 = vand.u32 %v1015, 4294901760
  %1017 = vmatpush1.msra.mxu0 %v1016
  %1018 = vmatprep.subr.mxu0 0.0
  %v1019 = vand.u32 %v504, 4294901760
  %v1020 = vsub.f32 %v504, %v1019
  %v1021 = vand.u32 %v1020, 4294901760
  %1022 = vmatpush1.msra.mxu0 %v1021
  %1023 = vmatprep.subr.mxu0 0.0
  %v1024 = vand.u32 %v505, 4294901760
  %v1025 = vsub.f32 %v505, %v1024
  %v1026 = vand.u32 %v1025, 4294901760
  %1027 = vmatpush1.msra.mxu0 %v1026
  %1028 = vmatprep.subr.mxu0 0.0
  %1029 = vmatpush1.msra.mxu0 0.0
  %1030 = vmatprep.subr.mxu0 0.0
  %1031 = vmatpush1.msra.mxu0 0.0
  %1032 = vmatprep.subr.mxu0 0.0
  %1033 = vmatpush1.msra.mxu0 0.0
  %1034 = vmatprep.subr.mxu0 0.0
  %1035 = vmatpush1.msra.mxu0 0.0
  %1036 = vmatprep.subr.mxu0 0.0
  %1037 = vmatpush1.msra.mxu0 0.0
  %1038 = vmatprep.subr.mxu0 0.0
  %1039 = vmatpush1.msra.mxu0 0.0
  %1040 = vmatprep.subr.mxu0 0.0
  %1041 = vmatpush1.msra.mxu0 0.0
  %1042 = vmatprep.subr.mxu0 0.0
  %1043 = vmatpush1.msra.mxu0 0.0
  %1044 = vmatprep.subr.mxu0 0.0
  %1045 = vmatpush1.msra.mxu0 0.0
  %1046 = vmatprep.subr.mxu0 0.0
  %1047 = vmatpush1.msra.mxu0 0.0
  %1048 = vmatprep.subr.mxu0 0.0
  %1049 = vmatpush1.msra.mxu0 0.0
  %1050 = vmatprep.subr.mxu0 0.0
  %1051 = vmatpush1.msra.mxu0 0.0
  %1052 = vmatprep.subr.mxu0 0.0
  %1053 = vmatpush1.msra.mxu0 0.0
  %1054 = vmatprep.subr.mxu0 0.0
  %1055 = vmatpush1.msra.mxu0 0.0
  %1056 = vmatprep.subr.mxu0 0.0
  %1057 = vmatpush1.msra.mxu0 0.0
  %1058 = vmatprep.subr.mxu0 0.0
  %1059 = vmatpush1.msra.mxu0 0.0
  %1060 = vmatprep.mubr.f32.mxu0 0.0
  %v1061 = vand.u32 %v489, 4294901760
  %1062 = vmatmul.mubr.f32.gmra.mrb[0].mxu0 %v1061
  %v1063 = vpop.f32.mrb[0].mxu0
  %v1064 = vadd.f32 %v945, %v1063
  %v1065 = vpop.f32.mrb[0].mxu0
  %1066 = vdwg.mxu0
  %1067 = vmatprep.subr.mxu0 0.0
  %v1068 = vand.u32 %v490, 4294901760
  %1069 = vmatpush1.msra.mxu0 %v1068
  %1070 = vmatprep.subr.mxu0 0.0
  %v1071 = vand.u32 %v491, 4294901760
  %1072 = vmatpush1.msra.mxu0 %v1071
  %1073 = vmatprep.subr.mxu0 0.0
  %v1074 = vand.u32 %v492, 4294901760
  %1075 = vmatpush1.msra.mxu0 %v1074
  %1076 = vmatprep.subr.mxu0 0.0
  %v1077 = vand.u32 %v493, 4294901760
  %1078 = vmatpush1.msra.mxu0 %v1077
  %1079 = vmatprep.subr.mxu0 0.0
  %v1080 = vand.u32 %v494, 4294901760
  %1081 = vmatpush1.msra.mxu0 %v1080
  %1082 = vmatprep.subr.mxu0 0.0
  %v1083 = vand.u32 %v495, 4294901760
  %1084 = vmatpush1.msra.mxu0 %v1083
  %1085 = vmatprep.subr.mxu0 0.0
  %v1086 = vand.u32 %v496, 4294901760
  %1087 = vmatpush1.msra.mxu0 %v1086
  %1088 = vmatprep.subr.mxu0 0.0
  %v1089 = vand.u32 %v497, 4294901760
  %1090 = vmatpush1.msra.mxu0 %v1089
  %1091 = vmatprep.subr.mxu0 0.0
  %v1092 = vand.u32 %v498, 4294901760
  %1093 = vmatpush1.msra.mxu0 %v1092
  %1094 = vmatprep.subr.mxu0 0.0
  %v1095 = vand.u32 %v499, 4294901760
  %1096 = vmatpush1.msra.mxu0 %v1095
  %1097 = vmatprep.subr.mxu0 0.0
  %v1098 = vand.u32 %v500, 4294901760
  %1099 = vmatpush1.msra.mxu0 %v1098
  %1100 = vmatprep.subr.mxu0 0.0
  %v1101 = vand.u32 %v501, 4294901760
  %1102 = vmatpush1.msra.mxu0 %v1101
  %1103 = vmatprep.subr.mxu0 0.0
  %v1104 = vand.u32 %v502, 4294901760
  %1105 = vmatpush1.msra.mxu0 %v1104
  %1106 = vmatprep.subr.mxu0 0.0
  %v1107 = vand.u32 %v503, 4294901760
  %1108 = vmatpush1.msra.mxu0 %v1107
  %1109 = vmatprep.subr.mxu0 0.0
  %v1110 = vand.u32 %v504, 4294901760
  %1111 = vmatpush1.msra.mxu0 %v1110
  %1112 = vmatprep.subr.mxu0 0.0
  %v1113 = vand.u32 %v505, 4294901760
  %1114 = vmatpush1.msra.mxu0 %v1113
  %1115 = vmatprep.subr.mxu0 0.0
  %1116 = vmatpush1.msra.mxu0 0.0
  %1117 = vmatprep.subr.mxu0 0.0
  %1118 = vmatpush1.msra.mxu0 0.0
  %1119 = vmatprep.subr.mxu0 0.0
  %1120 = vmatpush1.msra.mxu0 0.0
  %1121 = vmatprep.subr.mxu0 0.0
  %1122 = vmatpush1.msra.mxu0 0.0
  %1123 = vmatprep.subr.mxu0 0.0
  %1124 = vmatpush1.msra.mxu0 0.0
  %1125 = vmatprep.subr.mxu0 0.0
  %1126 = vmatpush1.msra.mxu0 0.0
  %1127 = vmatprep.subr.mxu0 0.0
  %1128 = vmatpush1.msra.mxu0 0.0
  %1129 = vmatprep.subr.mxu0 0.0
  %1130 = vmatpush1.msra.mxu0 0.0
  %1131 = vmatprep.subr.mxu0 0.0
  %1132 = vmatpush1.msra.mxu0 0.0
  %1133 = vmatprep.subr.mxu0 0.0
  %1134 = vmatpush1.msra.mxu0 0.0
  %1135 = vmatprep.subr.mxu0 0.0
  %1136 = vmatpush1.msra.mxu0 0.0
  %1137 = vmatprep.subr.mxu0 0.0
  %1138 = vmatpush1.msra.mxu0 0.0
  %1139 = vmatprep.subr.mxu0 0.0
  %1140 = vmatpush1.msra.mxu0 0.0
  %1141 = vmatprep.subr.mxu0 0.0
  %1142 = vmatpush1.msra.mxu0 0.0
  %1143 = vmatprep.subr.mxu0 0.0
  %1144 = vmatpush1.msra.mxu0 0.0
  %1145 = vmatprep.subr.mxu0 0.0
  %1146 = vmatpush1.msra.mxu0 0.0
  %1147 = vmatprep.mubr.f32.mxu0 0.0
  %v1148 = vand.u32 %v489, 4294901760
  %1149 = vmatmul.mubr.f32.gmra.mrb[0].mxu0 %v1148
  %v1150 = vpop.f32.mrb[0].mxu0
  %v1151 = vadd.f32 %v1064, %v1150
  %v1152 = vpop.f32.mrb[0].mxu0
  %1153 = vdwg.mxu0
  %v1154 = vmax.f32 %v1151, 0.0
  %v1155 = vld [vmem:[%s5] sm:$0xff]
  %v1156 = vld [vmem:[%s5 + $0x8] sm:$0xff]
  %v1157 = vld [vmem:[%s5 + $0x10] sm:$0xff]
  %v1158 = vld [vmem:[%s5 + $0x18] sm:$0xff]
  %v1159 = vld [vmem:[%s5 + $0x20] sm:$0xff]
  %v1160 = vld [vmem:[%s5 + $0x28] sm:$0xff]
  %v1161 = vld [vmem:[%s5 + $0x30] sm:$0xff]
  %v1162 = vld [vmem:[%s5 + $0x38] sm:$0xff]
  %v1163 = vld [vmem:[%s5 + $0x40] sm:$0xff]
  %v1164 = vld [vmem:[%s5 + $0x48] sm:$0xff]
  %v1165 = vld [vmem:[%s5 + $0x50] sm:$0xff]
  %v1166 = vld [vmem:[%s5 + $0x58] sm:$0xff]
  %v1167 = vld [vmem:[%s5 + $0x60] sm:$0xff]
  %v1168 = vld [vmem:[%s5 + $0x68] sm:$0xff]
  %v1169 = vld [vmem:[%s5 + $0x70] sm:$0xff]
  %v1170 = vld [vmem:[%s5 + $0x78] sm:$0xff]
  %v1171 = vld [vmem:[%s6] sm:$0x1]
  %v1173 = vlaneseq
  %v1174 = vshrl.u32 %v1173, 7
  %v1175 = vsub.s32 0, %v1174
  %v1176 = vrot.slane %v1171, %v1175
  %1178 = vmatprep.subr.mxu0 0.0
  %v1179 = vand.u32 %v1155, 4294901760
  %1180 = vmatpush1.msra.mxu0 %v1179
  %1181 = vmatprep.subr.mxu0 0.0
  %v1182 = vand.u32 %v1156, 4294901760
  %1183 = vmatpush1.msra.mxu0 %v1182
  %1184 = vmatprep.subr.mxu0 0.0
  %v1185 = vand.u32 %v1157, 4294901760
  %1186 = vmatpush1.msra.mxu0 %v1185
  %1187 = vmatprep.subr.mxu0 0.0
  %v1188 = vand.u32 %v1158, 4294901760
  %1189 = vmatpush1.msra.mxu0 %v1188
  %1190 = vmatprep.subr.mxu0 0.0
  %v1191 = vand.u32 %v1159, 4294901760
  %1192 = vmatpush1.msra.mxu0 %v1191
  %1193 = vmatprep.subr.mxu0 0.0
  %v1194 = vand.u32 %v1160, 4294901760
  %1195 = vmatpush1.msra.mxu0 %v1194
  %1196 = vmatprep.subr.mxu0 0.0
  %v1197 = vand.u32 %v1161, 4294901760
  %1198 = vmatpush1.msra.mxu0 %v1197
  %1199 = vmatprep.subr.mxu0 0.0
  %v1200 = vand.u32 %v1162, 4294901760
  %1201 = vmatpush1.msra.mxu0 %v1200
  %1202 = vmatprep.subr.mxu0 0.0
  %v1203 = vand.u32 %v1163, 4294901760
  %1204 = vmatpush1.msra.mxu0 %v1203
  %1205 = vmatprep.subr.mxu0 0.0
  %v1206 = vand.u32 %v1164, 4294901760
  %1207 = vmatpush1.msra.mxu0 %v1206
  %1208 = vmatprep.subr.mxu0 0.0
  %v1209 = vand.u32 %v1165, 4294901760
  %1210 = vmatpush1.msra.mxu0 %v1209
  %1211 = vmatprep.subr.mxu0 0.0
  %v1212 = vand.u32 %v1166, 4294901760
  %1213 = vmatpush1.msra.mxu0 %v1212
  %1214 = vmatprep.subr.mxu0 0.0
  %v1215 = vand.u32 %v1167, 4294901760
  %1216 = vmatpush1.msra.mxu0 %v1215
  %1217 = vmatprep.subr.mxu0 0.0
  %v1218 = vand.u32 %v1168, 4294901760
  %1219 = vmatpush1.msra.mxu0 %v1218
  %1220 = vmatprep.subr.mxu0 0.0
  %v1221 = vand.u32 %v1169, 4294901760
  %1222 = vmatpush1.msra.mxu0 %v1221
  %1223 = vmatprep.subr.mxu0 0.0
  %v1224 = vand.u32 %v1170, 4294901760
  %1225 = vmatpush1.msra.mxu0 %v1224
  %1226 = vmatprep.subr.mxu0 0.0
  %1227 = vmatpush1.msra.mxu0 0.0
  %1228 = vmatprep.subr.mxu0 0.0
  %1229 = vmatpush1.msra.mxu0 0.0
  %1230 = vmatprep.subr.mxu0 0.0
  %1231 = vmatpush1.msra.mxu0 0.0
  %1232 = vmatprep.subr.mxu0 0.0
  %1233 = vmatpush1.msra.mxu0 0.0
  %1234 = vmatprep.subr.mxu0 0.0
  %1235 = vmatpush1.msra.mxu0 0.0
  %1236 = vmatprep.subr.mxu0 0.0
  %1237 = vmatpush1.msra.mxu0 0.0
  %1238 = vmatprep.subr.mxu0 0.0
  %1239 = vmatpush1.msra.mxu0 0.0
  %1240 = vmatprep.subr.mxu0 0.0
  %1241 = vmatpush1.msra.mxu0 0.0
  %1242 = vmatprep.subr.mxu0 0.0
  %1243 = vmatpush1.msra.mxu0 0.0
  %1244 = vmatprep.subr.mxu0 0.0
  %1245 = vmatpush1.msra.mxu0 0.0
  %1246 = vmatprep.subr.mxu0 0.0
  %1247 = vmatpush1.msra.mxu0 0.0
  %1248 = vmatprep.subr.mxu0 0.0
  %1249 = vmatpush1.msra.mxu0 0.0
  %1250 = vmatprep.subr.mxu0 0.0
  %1251 = vmatpush1.msra.mxu0 0.0
  %1252 = vmatprep.subr.mxu0 0.0
  %1253 = vmatpush1.msra.mxu0 0.0
  %1254 = vmatprep.subr.mxu0 0.0
  %1255 = vmatpush1.msra.mxu0 0.0
  %1256 = vmatprep.subr.mxu0 0.0
  %1257 = vmatpush1.msra.mxu0 0.0
  %1258 = vmatprep.mubr.f32.mxu0 0.0
  %v1259 = vand.u32 %v1154, 4294901760
  %v1260 = vsub.f32 %v1154, %v1259
  %v1261 = vand.u32 %v1260, 4294901760
  %v1262 = vsub.f32 %v1260, %v1261
  %v1263 = vand.u32 %v1262, 4294901760
  %1264 = vmatmul.mubr.f32.gmra.mrb[0].mxu0 %v1263
  %v1265 = vpop.f32.mrb[0].mxu0
  %v1266 = vadd.f32 %v1176, %v1265
  %v1267 = vpop.f32.mrb[0].mxu0
  %1268 = vdwg.mxu0
  %1269 = vmatprep.subr.mxu0 0.0
  %v1270 = vand.u32 %v1155, 4294901760
  %v1271 = vsub.f32 %v1155, %v1270
  %v1272 = vand.u32 %v1271, 4294901760
  %v1273 = vsub.f32 %v1271, %v1272
  %v1274 = vand.u32 %v1273, 4294901760
  %1275 = vmatpush1.msra.mxu0 %v1274
  %1276 = vmatprep.subr.mxu0 0.0
  %v1277 = vand.u32 %v1156, 4294901760
  %v1278 = vsub.f32 %v1156, %v1277
  %v1279 = vand.u32 %v1278, 4294901760
  %v1280 = vsub.f32 %v1278, %v1279
  %v1281 = vand.u32 %v1280, 4294901760
  %1282 = vmatpush1.msra.mxu0 %v1281
  %1283 = vmatprep.subr.mxu0 0.0
  %v1284 = vand.u32 %v1157, 4294901760
  %v1285 = vsub.f32 %v1157, %v1284
  %v1286 = vand.u32 %v1285, 4294901760
  %v1287 = vsub.f32 %v1285, %v1286
  %v1288 = vand.u32 %v1287, 4294901760
  %1289 = vmatpush1.msra.mxu0 %v1288
  %1290 = vmatprep.subr.mxu0 0.0
  %v1291 = vand.u32 %v1158, 4294901760
  %v1292 = vsub.f32 %v1158, %v1291
  %v1293 = vand.u32 %v1292, 4294901760
  %v1294 = vsub.f32 %v1292, %v1293
  %v1295 = vand.u32 %v1294, 4294901760
  %1296 = vmatpush1.msra.mxu0 %v1295
  %1297 = vmatprep.subr.mxu0 0.0
  %v1298 = vand.u32 %v1159, 4294901760
  %v1299 = vsub.f32 %v1159, %v1298
  %v1300 = vand.u32 %v1299, 4294901760
  %v1301 = vsub.f32 %v1299, %v1300
  %v1302 = vand.u32 %v1301, 4294901760
  %1303 = vmatpush1.msra.mxu0 %v1302
  %1304 = vmatprep.subr.mxu0 0.0
  %v1305 = vand.u32 %v1160, 4294901760
  %v1306 = vsub.f32 %v1160, %v1305
  %v1307 = vand.u32 %v1306, 4294901760
  %v1308 = vsub.f32 %v1306, %v1307
  %v1309 = vand.u32 %v1308, 4294901760
  %1310 = vmatpush1.msra.mxu0 %v1309
  %1311 = vmatprep.subr.mxu0 0.0
  %v1312 = vand.u32 %v1161, 4294901760
  %v1313 = vsub.f32 %v1161, %v1312
  %v1314 = vand.u32 %v1313, 4294901760
  %v1315 = vsub.f32 %v1313, %v1314
  %v1316 = vand.u32 %v1315, 4294901760
  %1317 = vmatpush1.msra.mxu0 %v1316
  %1318 = vmatprep.subr.mxu0 0.0
  %v1319 = vand.u32 %v1162, 4294901760
  %v1320 = vsub.f32 %v1162, %v1319
  %v1321 = vand.u32 %v1320, 4294901760
  %v1322 = vsub.f32 %v1320, %v1321
  %v1323 = vand.u32 %v1322, 4294901760
  %1324 = vmatpush1.msra.mxu0 %v1323
  %1325 = vmatprep.subr.mxu0 0.0
  %v1326 = vand.u32 %v1163, 4294901760
  %v1327 = vsub.f32 %v1163, %v1326
  %v1328 = vand.u32 %v1327, 4294901760
  %v1329 = vsub.f32 %v1327, %v1328
  %v1330 = vand.u32 %v1329, 4294901760
  %1331 = vmatpush1.msra.mxu0 %v1330
  %1332 = vmatprep.subr.mxu0 0.0
  %v1333 = vand.u32 %v1164, 4294901760
  %v1334 = vsub.f32 %v1164, %v1333
  %v1335 = vand.u32 %v1334, 4294901760
  %v1336 = vsub.f32 %v1334, %v1335
  %v1337 = vand.u32 %v1336, 4294901760
  %1338 = vmatpush1.msra.mxu0 %v1337
  %1339 = vmatprep.subr.mxu0 0.0
  %v1340 = vand.u32 %v1165, 4294901760
  %v1341 = vsub.f32 %v1165, %v1340
  %v1342 = vand.u32 %v1341, 4294901760
  %v1343 = vsub.f32 %v1341, %v1342
  %v1344 = vand.u32 %v1343, 4294901760
  %1345 = vmatpush1.msra.mxu0 %v1344
  %1346 = vmatprep.subr.mxu0 0.0
  %v1347 = vand.u32 %v1166, 4294901760
  %v1348 = vsub.f32 %v1166, %v1347
  %v1349 = vand.u32 %v1348, 4294901760
  %v1350 = vsub.f32 %v1348, %v1349
  %v1351 = vand.u32 %v1350, 4294901760
  %1352 = vmatpush1.msra.mxu0 %v1351
  %1353 = vmatprep.subr.mxu0 0.0
  %v1354 = vand.u32 %v1167, 4294901760
  %v1355 = vsub.f32 %v1167, %v1354
  %v1356 = vand.u32 %v1355, 4294901760
  %v1357 = vsub.f32 %v1355, %v1356
  %v1358 = vand.u32 %v1357, 4294901760
  %1359 = vmatpush1.msra.mxu0 %v1358
  %1360 = vmatprep.subr.mxu0 0.0
  %v1361 = vand.u32 %v1168, 4294901760
  %v1362 = vsub.f32 %v1168, %v1361
  %v1363 = vand.u32 %v1362, 4294901760
  %v1364 = vsub.f32 %v1362, %v1363
  %v1365 = vand.u32 %v1364, 4294901760
  %1366 = vmatpush1.msra.mxu0 %v1365
  %1367 = vmatprep.subr.mxu0 0.0
  %v1368 = vand.u32 %v1169, 4294901760
  %v1369 = vsub.f32 %v1169, %v1368
  %v1370 = vand.u32 %v1369, 4294901760
  %v1371 = vsub.f32 %v1369, %v1370
  %v1372 = vand.u32 %v1371, 4294901760
  %1373 = vmatpush1.msra.mxu0 %v1372
  %1374 = vmatprep.subr.mxu0 0.0
  %v1375 = vand.u32 %v1170, 4294901760
  %v1376 = vsub.f32 %v1170, %v1375
  %v1377 = vand.u32 %v1376, 4294901760
  %v1378 = vsub.f32 %v1376, %v1377
  %v1379 = vand.u32 %v1378, 4294901760
  %1380 = vmatpush1.msra.mxu0 %v1379
  %1381 = vmatprep.subr.mxu0 0.0
  %1382 = vmatpush1.msra.mxu0 0.0
  %1383 = vmatprep.subr.mxu0 0.0
  %1384 = vmatpush1.msra.mxu0 0.0
  %1385 = vmatprep.subr.mxu0 0.0
  %1386 = vmatpush1.msra.mxu0 0.0
  %1387 = vmatprep.subr.mxu0 0.0
  %1388 = vmatpush1.msra.mxu0 0.0
  %1389 = vmatprep.subr.mxu0 0.0
  %1390 = vmatpush1.msra.mxu0 0.0
  %1391 = vmatprep.subr.mxu0 0.0
  %1392 = vmatpush1.msra.mxu0 0.0
  %1393 = vmatprep.subr.mxu0 0.0
  %1394 = vmatpush1.msra.mxu0 0.0
  %1395 = vmatprep.subr.mxu0 0.0
  %1396 = vmatpush1.msra.mxu0 0.0
  %1397 = vmatprep.subr.mxu0 0.0
  %1398 = vmatpush1.msra.mxu0 0.0
  %1399 = vmatprep.subr.mxu0 0.0
  %1400 = vmatpush1.msra.mxu0 0.0
  %1401 = vmatprep.subr.mxu0 0.0
  %1402 = vmatpush1.msra.mxu0 0.0
  %1403 = vmatprep.subr.mxu0 0.0
  %1404 = vmatpush1.msra.mxu0 0.0
  %1405 = vmatprep.subr.mxu0 0.0
  %1406 = vmatpush1.msra.mxu0 0.0
  %1407 = vmatprep.subr.mxu0 0.0
  %1408 = vmatpush1.msra.mxu0 0.0
  %1409 = vmatprep.subr.mxu0 0.0
  %1410 = vmatpush1.msra.mxu0 0.0
  %1411 = vmatprep.subr.mxu0 0.0
  %1412 = vmatpush1.msra.mxu0 0.0
  %1413 = vmatprep.mubr.f32.mxu0 0.0
  %v1414 = vand.u32 %v1154, 4294901760
  %1415 = vmatmul.mubr.f32.gmra.mrb[0].mxu0 %v1414
  %v1416 = vpop.f32.mrb[0].mxu0
  %v1417 = vadd.f32 %v1266, %v1416
  %v1418 = vpop.f32.mrb[0].mxu0
  %1419 = vdwg.mxu0
  %1420 = vmatprep.subr.mxu0 0.0
  %v1421 = vand.u32 %v1155, 4294901760
  %v1422 = vsub.f32 %v1155, %v1421
  %1423 = vmatpush1.msra.mxu0 %v1422
  %1424 = vmatprep.subr.mxu0 0.0
  %v1425 = vand.u32 %v1156, 4294901760
  %v1426 = vsub.f32 %v1156, %v1425
  %1427 = vmatpush1.msra.mxu0 %v1426
  %1428 = vmatprep.subr.mxu0 0.0
  %v1429 = vand.u32 %v1157, 4294901760
  %v1430 = vsub.f32 %v1157, %v1429
  %1431 = vmatpush1.msra.mxu0 %v1430
  %1432 = vmatprep.subr.mxu0 0.0
  %v1433 = vand.u32 %v1158, 4294901760
  %v1434 = vsub.f32 %v1158, %v1433
  %1435 = vmatpush1.msra.mxu0 %v1434
  %1436 = vmatprep.subr.mxu0 0.0
  %v1437 = vand.u32 %v1159, 4294901760
  %v1438 = vsub.f32 %v1159, %v1437
  %1439 = vmatpush1.msra.mxu0 %v1438
  %1440 = vmatprep.subr.mxu0 0.0
  %v1441 = vand.u32 %v1160, 4294901760
  %v1442 = vsub.f32 %v1160, %v1441
  %1443 = vmatpush1.msra.mxu0 %v1442
  %1444 = vmatprep.subr.mxu0 0.0
  %v1445 = vand.u32 %v1161, 4294901760
  %v1446 = vsub.f32 %v1161, %v1445
  %1447 = vmatpush1.msra.mxu0 %v1446
  %1448 = vmatprep.subr.mxu0 0.0
  %v1449 = vand.u32 %v1162, 4294901760
  %v1450 = vsub.f32 %v1162, %v1449
  %1451 = vmatpush1.msra.mxu0 %v1450
  %1452 = vmatprep.subr.mxu0 0.0
  %v1453 = vand.u32 %v1163, 4294901760
  %v1454 = vsub.f32 %v1163, %v1453
  %1455 = vmatpush1.msra.mxu0 %v1454
  %1456 = vmatprep.subr.mxu0 0.0
  %v1457 = vand.u32 %v1164, 4294901760
  %v1458 = vsub.f32 %v1164, %v1457
  %1459 = vmatpush1.msra.mxu0 %v1458
  %1460 = vmatprep.subr.mxu0 0.0
  %v1461 = vand.u32 %v1165, 4294901760
  %v1462 = vsub.f32 %v1165, %v1461
  %1463 = vmatpush1.msra.mxu0 %v1462
  %1464 = vmatprep.subr.mxu0 0.0
  %v1465 = vand.u32 %v1166, 4294901760
  %v1466 = vsub.f32 %v1166, %v1465
  %1467 = vmatpush1.msra.mxu0 %v1466
  %1468 = vmatprep.subr.mxu0 0.0
  %v1469 = vand.u32 %v1167, 4294901760
  %v1470 = vsub.f32 %v1167, %v1469
  %1471 = vmatpush1.msra.mxu0 %v1470
  %1472 = vmatprep.subr.mxu0 0.0
  %v1473 = vand.u32 %v1168, 4294901760
  %v1474 = vsub.f32 %v1168, %v1473
  %1475 = vmatpush1.msra.mxu0 %v1474
  %1476 = vmatprep.subr.mxu0 0.0
  %v1477 = vand.u32 %v1169, 4294901760
  %v1478 = vsub.f32 %v1169, %v1477
  %1479 = vmatpush1.msra.mxu0 %v1478
  %1480 = vmatprep.subr.mxu0 0.0
  %v1481 = vand.u32 %v1170, 4294901760
  %v1482 = vsub.f32 %v1170, %v1481
  %1483 = vmatpush1.msra.mxu0 %v1482
  %1484 = vmatprep.subr.mxu0 0.0
  %1485 = vmatpush1.msra.mxu0 0.0
  %1486 = vmatprep.subr.mxu0 0.0
  %1487 = vmatpush1.msra.mxu0 0.0
  %1488 = vmatprep.subr.mxu0 0.0
  %1489 = vmatpush1.msra.mxu0 0.0
  %1490 = vmatprep.subr.mxu0 0.0
  %1491 = vmatpush1.msra.mxu0 0.0
  %1492 = vmatprep.subr.mxu0 0.0
  %1493 = vmatpush1.msra.mxu0 0.0
  %1494 = vmatprep.subr.mxu0 0.0
  %1495 = vmatpush1.msra.mxu0 0.0
  %1496 = vmatprep.subr.mxu0 0.0
  %1497 = vmatpush1.msra.mxu0 0.0
  %1498 = vmatprep.subr.mxu0 0.0
  %1499 = vmatpush1.msra.mxu0 0.0
  %1500 = vmatprep.subr.mxu0 0.0
  %1501 = vmatpush1.msra.mxu0 0.0
  %1502 = vmatprep.subr.mxu0 0.0
  %1503 = vmatpush1.msra.mxu0 0.0
  %1504 = vmatprep.subr.mxu0 0.0
  %1505 = vmatpush1.msra.mxu0 0.0
  %1506 = vmatprep.subr.mxu0 0.0
  %1507 = vmatpush1.msra.mxu0 0.0
  %1508 = vmatprep.subr.mxu0 0.0
  %1509 = vmatpush1.msra.mxu0 0.0
  %1510 = vmatprep.subr.mxu0 0.0
  %1511 = vmatpush1.msra.mxu0 0.0
  %1512 = vmatprep.subr.mxu0 0.0
  %1513 = vmatpush1.msra.mxu0 0.0
  %1514 = vmatprep.subr.mxu0 0.0
  %1515 = vmatpush1.msra.mxu0 0.0
  %1516 = vmatprep.mubr.f32.mxu0 0.0
  %v1517 = vand.u32 %v1154, 4294901760
  %v1518 = vsub.f32 %v1154, %v1517
  %1519 = vmatmul.mubr.f32.gmra.mrb[0].mxu0 %v1518
  %v1520 = vpop.f32.mrb[0].mxu0
  %v1521 = vadd.f32 %v1417, %v1520
  %v1522 = vpop.f32.mrb[0].mxu0
  %1523 = vdwg.mxu0
  %1524 = vmatprep.subr.mxu0 0.0
  %v1525 = vand.u32 %v1155, 4294901760
  %1526 = vmatpush1.msra.mxu0 %v1525
  %1527 = vmatprep.subr.mxu0 0.0
  %v1528 = vand.u32 %v1156, 4294901760
  %1529 = vmatpush1.msra.mxu0 %v1528
  %1530 = vmatprep.subr.mxu0 0.0
  %v1531 = vand.u32 %v1157, 4294901760
  %1532 = vmatpush1.msra.mxu0 %v1531
  %1533 = vmatprep.subr.mxu0 0.0
  %v1534 = vand.u32 %v1158, 4294901760
  %1535 = vmatpush1.msra.mxu0 %v1534
  %1536 = vmatprep.subr.mxu0 0.0
  %v1537 = vand.u32 %v1159, 4294901760
  %1538 = vmatpush1.msra.mxu0 %v1537
  %1539 = vmatprep.subr.mxu0 0.0
  %v1540 = vand.u32 %v1160, 4294901760
  %1541 = vmatpush1.msra.mxu0 %v1540
  %1542 = vmatprep.subr.mxu0 0.0
  %v1543 = vand.u32 %v1161, 4294901760
  %1544 = vmatpush1.msra.mxu0 %v1543
  %1545 = vmatprep.subr.mxu0 0.0
  %v1546 = vand.u32 %v1162, 4294901760
  %1547 = vmatpush1.msra.mxu0 %v1546
  %1548 = vmatprep.subr.mxu0 0.0
  %v1549 = vand.u32 %v1163, 4294901760
  %1550 = vmatpush1.msra.mxu0 %v1549
  %1551 = vmatprep.subr.mxu0 0.0
  %v1552 = vand.u32 %v1164, 4294901760
  %1553 = vmatpush1.msra.mxu0 %v1552
  %1554 = vmatprep.subr.mxu0 0.0
  %v1555 = vand.u32 %v1165, 4294901760
  %1556 = vmatpush1.msra.mxu0 %v1555
  %1557 = vmatprep.subr.mxu0 0.0
  %v1558 = vand.u32 %v1166, 4294901760
  %1559 = vmatpush1.msra.mxu0 %v1558
  %1560 = vmatprep.subr.mxu0 0.0
  %v1561 = vand.u32 %v1167, 4294901760
  %1562 = vmatpush1.msra.mxu0 %v1561
  %1563 = vmatprep.subr.mxu0 0.0
  %v1564 = vand.u32 %v1168, 4294901760
  %1565 = vmatpush1.msra.mxu0 %v1564
  %1566 = vmatprep.subr.mxu0 0.0
  %v1567 = vand.u32 %v1169, 4294901760
  %1568 = vmatpush1.msra.mxu0 %v1567
  %1569 = vmatprep.subr.mxu0 0.0
  %v1570 = vand.u32 %v1170, 4294901760
  %1571 = vmatpush1.msra.mxu0 %v1570
  %1572 = vmatprep.subr.mxu0 0.0
  %1573 = vmatpush1.msra.mxu0 0.0
  %1574 = vmatprep.subr.mxu0 0.0
  %1575 = vmatpush1.msra.mxu0 0.0
  %1576 = vmatprep.subr.mxu0 0.0
  %1577 = vmatpush1.msra.mxu0 0.0
  %1578 = vmatprep.subr.mxu0 0.0
  %1579 = vmatpush1.msra.mxu0 0.0
  %1580 = vmatprep.subr.mxu0 0.0
  %1581 = vmatpush1.msra.mxu0 0.0
  %1582 = vmatprep.subr.mxu0 0.0
  %1583 = vmatpush1.msra.mxu0 0.0
  %1584 = vmatprep.subr.mxu0 0.0
  %1585 = vmatpush1.msra.mxu0 0.0
  %1586 = vmatprep.subr.mxu0 0.0
  %1587 = vmatpush1.msra.mxu0 0.0
  %1588 = vmatprep.subr.mxu0 0.0
  %1589 = vmatpush1.msra.mxu0 0.0
  %1590 = vmatprep.subr.mxu0 0.0
  %1591 = vmatpush1.msra.mxu0 0.0
  %1592 = vmatprep.subr.mxu0 0.0
  %1593 = vmatpush1.msra.mxu0 0.0
  %1594 = vmatprep.subr.mxu0 0.0
  %1595 = vmatpush1.msra.mxu0 0.0
  %1596 = vmatprep.subr.mxu0 0.0
  %1597 = vmatpush1.msra.mxu0 0.0
  %1598 = vmatprep.subr.mxu0 0.0
  %1599 = vmatpush1.msra.mxu0 0.0
  %1600 = vmatprep.subr.mxu0 0.0
  %1601 = vmatpush1.msra.mxu0 0.0
  %1602 = vmatprep.subr.mxu0 0.0
  %1603 = vmatpush1.msra.mxu0 0.0
  %1604 = vmatprep.mubr.f32.mxu0 0.0
  %v1605 = vand.u32 %v1154, 4294901760
  %v1606 = vsub.f32 %v1154, %v1605
  %v1607 = vand.u32 %v1606, 4294901760
  %1608 = vmatmul.mubr.f32.gmra.mrb[0].mxu0 %v1607
  %v1609 = vpop.f32.mrb[0].mxu0
  %v1610 = vadd.f32 %v1521, %v1609
  %v1611 = vpop.f32.mrb[0].mxu0
  %1612 = vdwg.mxu0
  %1613 = vmatprep.subr.mxu0 0.0
  %v1614 = vand.u32 %v1155, 4294901760
  %v1615 = vsub.f32 %v1155, %v1614
  %v1616 = vand.u32 %v1615, 4294901760
  %1617 = vmatpush1.msra.mxu0 %v1616
  %1618 = vmatprep.subr.mxu0 0.0
  %v1619 = vand.u32 %v1156, 4294901760
  %v1620 = vsub.f32 %v1156, %v1619
  %v1621 = vand.u32 %v1620, 4294901760
  %1622 = vmatpush1.msra.mxu0 %v1621
  %1623 = vmatprep.subr.mxu0 0.0
  %v1624 = vand.u32 %v1157, 4294901760
  %v1625 = vsub.f32 %v1157, %v1624
  %v1626 = vand.u32 %v1625, 4294901760
  %1627 = vmatpush1.msra.mxu0 %v1626
  %1628 = vmatprep.subr.mxu0 0.0
  %v1629 = vand.u32 %v1158, 4294901760
  %v1630 = vsub.f32 %v1158, %v1629
  %v1631 = vand.u32 %v1630, 4294901760
  %1632 = vmatpush1.msra.mxu0 %v1631
  %1633 = vmatprep.subr.mxu0 0.0
  %v1634 = vand.u32 %v1159, 4294901760
  %v1635 = vsub.f32 %v1159, %v1634
  %v1636 = vand.u32 %v1635, 4294901760
  %1637 = vmatpush1.msra.mxu0 %v1636
  %1638 = vmatprep.subr.mxu0 0.0
  %v1639 = vand.u32 %v1160, 4294901760
  %v1640 = vsub.f32 %v1160, %v1639
  %v1641 = vand.u32 %v1640, 4294901760
  %1642 = vmatpush1.msra.mxu0 %v1641
  %1643 = vmatprep.subr.mxu0 0.0
  %v1644 = vand.u32 %v1161, 4294901760
  %v1645 = vsub.f32 %v1161, %v1644
  %v1646 = vand.u32 %v1645, 4294901760
  %1647 = vmatpush1.msra.mxu0 %v1646
  %1648 = vmatprep.subr.mxu0 0.0
  %v1649 = vand.u32 %v1162, 4294901760
  %v1650 = vsub.f32 %v1162, %v1649
  %v1651 = vand.u32 %v1650, 4294901760
  %1652 = vmatpush1.msra.mxu0 %v1651
  %1653 = vmatprep.subr.mxu0 0.0
  %v1654 = vand.u32 %v1163, 4294901760
  %v1655 = vsub.f32 %v1163, %v1654
  %v1656 = vand.u32 %v1655, 4294901760
  %1657 = vmatpush1.msra.mxu0 %v1656
  %1658 = vmatprep.subr.mxu0 0.0
  %v1659 = vand.u32 %v1164, 4294901760
  %v1660 = vsub.f32 %v1164, %v1659
  %v1661 = vand.u32 %v1660, 4294901760
  %1662 = vmatpush1.msra.mxu0 %v1661
  %1663 = vmatprep.subr.mxu0 0.0
  %v1664 = vand.u32 %v1165, 4294901760
  %v1665 = vsub.f32 %v1165, %v1664
  %v1666 = vand.u32 %v1665, 4294901760
  %1667 = vmatpush1.msra.mxu0 %v1666
  %1668 = vmatprep.subr.mxu0 0.0
  %v1669 = vand.u32 %v1166, 4294901760
  %v1670 = vsub.f32 %v1166, %v1669
  %v1671 = vand.u32 %v1670, 4294901760
  %1672 = vmatpush1.msra.mxu0 %v1671
  %1673 = vmatprep.subr.mxu0 0.0
  %v1674 = vand.u32 %v1167, 4294901760
  %v1675 = vsub.f32 %v1167, %v1674
  %v1676 = vand.u32 %v1675, 4294901760
  %1677 = vmatpush1.msra.mxu0 %v1676
  %1678 = vmatprep.subr.mxu0 0.0
  %v1679 = vand.u32 %v1168, 4294901760
  %v1680 = vsub.f32 %v1168, %v1679
  %v1681 = vand.u32 %v1680, 4294901760
  %1682 = vmatpush1.msra.mxu0 %v1681
  %1683 = vmatprep.subr.mxu0 0.0
  %v1684 = vand.u32 %v1169, 4294901760
  %v1685 = vsub.f32 %v1169, %v1684
  %v1686 = vand.u32 %v1685, 4294901760
  %1687 = vmatpush1.msra.mxu0 %v1686
  %1688 = vmatprep.subr.mxu0 0.0
  %v1689 = vand.u32 %v1170, 4294901760
  %v1690 = vsub.f32 %v1170, %v1689
  %v1691 = vand.u32 %v1690, 4294901760
  %1692 = vmatpush1.msra.mxu0 %v1691
  %1693 = vmatprep.subr.mxu0 0.0
  %1694 = vmatpush1.msra.mxu0 0.0
  %1695 = vmatprep.subr.mxu0 0.0
  %1696 = vmatpush1.msra.mxu0 0.0
  %1697 = vmatprep.subr.mxu0 0.0
  %1698 = vmatpush1.msra.mxu0 0.0
  %1699 = vmatprep.subr.mxu0 0.0
  %1700 = vmatpush1.msra.mxu0 0.0
  %1701 = vmatprep.subr.mxu0 0.0
  %1702 = vmatpush1.msra.mxu0 0.0
  %1703 = vmatprep.subr.mxu0 0.0
  %1704 = vmatpush1.msra.mxu0 0.0
  %1705 = vmatprep.subr.mxu0 0.0
  %1706 = vmatpush1.msra.mxu0 0.0
  %1707 = vmatprep.subr.mxu0 0.0
  %1708 = vmatpush1.msra.mxu0 0.0
  %1709 = vmatprep.subr.mxu0 0.0
  %1710 = vmatpush1.msra.mxu0 0.0
  %1711 = vmatprep.subr.mxu0 0.0
  %1712 = vmatpush1.msra.mxu0 0.0
  %1713 = vmatprep.subr.mxu0 0.0
  %1714 = vmatpush1.msra.mxu0 0.0
  %1715 = vmatprep.subr.mxu0 0.0
  %1716 = vmatpush1.msra.mxu0 0.0
  %1717 = vmatprep.subr.mxu0 0.0
  %1718 = vmatpush1.msra.mxu0 0.0
  %1719 = vmatprep.subr.mxu0 0.0
  %1720 = vmatpush1.msra.mxu0 0.0
  %1721 = vmatprep.subr.mxu0 0.0
  %1722 = vmatpush1.msra.mxu0 0.0
  %1723 = vmatprep.subr.mxu0 0.0
  %1724 = vmatpush1.msra.mxu0 0.0
  %1725 = vmatprep.mubr.f32.mxu0 0.0
  %v1726 = vand.u32 %v1154, 4294901760
  %1727 = vmatmul.mubr.f32.gmra.mrb[0].mxu0 %v1726
  %v1728 = vpop.f32.mrb[0].mxu0
  %v1729 = vadd.f32 %v1610, %v1728
  %v1730 = vpop.f32.mrb[0].mxu0
  %1731 = vdwg.mxu0
  %1732 = vmatprep.subr.mxu0 0.0
  %v1733 = vand.u32 %v1155, 4294901760
  %1734 = vmatpush1.msra.mxu0 %v1733
  %1735 = vmatprep.subr.mxu0 0.0
  %v1736 = vand.u32 %v1156, 4294901760
  %1737 = vmatpush1.msra.mxu0 %v1736
  %1738 = vmatprep.subr.mxu0 0.0
  %v1739 = vand.u32 %v1157, 4294901760
  %1740 = vmatpush1.msra.mxu0 %v1739
  %1741 = vmatprep.subr.mxu0 0.0
  %v1742 = vand.u32 %v1158, 4294901760
  %1743 = vmatpush1.msra.mxu0 %v1742
  %1744 = vmatprep.subr.mxu0 0.0
  %v1745 = vand.u32 %v1159, 4294901760
  %1746 = vmatpush1.msra.mxu0 %v1745
  %1747 = vmatprep.subr.mxu0 0.0
  %v1748 = vand.u32 %v1160, 4294901760
  %1749 = vmatpush1.msra.mxu0 %v1748
  %1750 = vmatprep.subr.mxu0 0.0
  %v1751 = vand.u32 %v1161, 4294901760
  %1752 = vmatpush1.msra.mxu0 %v1751
  %1753 = vmatprep.subr.mxu0 0.0
  %v1754 = vand.u32 %v1162, 4294901760
  %1755 = vmatpush1.msra.mxu0 %v1754
  %1756 = vmatprep.subr.mxu0 0.0
  %v1757 = vand.u32 %v1163, 4294901760
  %1758 = vmatpush1.msra.mxu0 %v1757
  %1759 = vmatprep.subr.mxu0 0.0
  %v1760 = vand.u32 %v1164, 4294901760
  %1761 = vmatpush1.msra.mxu0 %v1760
  %1762 = vmatprep.subr.mxu0 0.0
  %v1763 = vand.u32 %v1165, 4294901760
  %1764 = vmatpush1.msra.mxu0 %v1763
  %1765 = vmatprep.subr.mxu0 0.0
  %v1766 = vand.u32 %v1166, 4294901760
  %1767 = vmatpush1.msra.mxu0 %v1766
  %1768 = vmatprep.subr.mxu0 0.0
  %v1769 = vand.u32 %v1167, 4294901760
  %1770 = vmatpush1.msra.mxu0 %v1769
  %1771 = vmatprep.subr.mxu0 0.0
  %v1772 = vand.u32 %v1168, 4294901760
  %1773 = vmatpush1.msra.mxu0 %v1772
  %1774 = vmatprep.subr.mxu0 0.0
  %v1775 = vand.u32 %v1169, 4294901760
  %1776 = vmatpush1.msra.mxu0 %v1775
  %1777 = vmatprep.subr.mxu0 0.0
  %v1778 = vand.u32 %v1170, 4294901760
  %1779 = vmatpush1.msra.mxu0 %v1778
  %1780 = vmatprep.subr.mxu0 0.0
  %1781 = vmatpush1.msra.mxu0 0.0
  %1782 = vmatprep.subr.mxu0 0.0
  %1783 = vmatpush1.msra.mxu0 0.0
  %1784 = vmatprep.subr.mxu0 0.0
  %1785 = vmatpush1.msra.mxu0 0.0
  %1786 = vmatprep.subr.mxu0 0.0
  %1787 = vmatpush1.msra.mxu0 0.0
  %1788 = vmatprep.subr.mxu0 0.0
  %1789 = vmatpush1.msra.mxu0 0.0
  %1790 = vmatprep.subr.mxu0 0.0
  %1791 = vmatpush1.msra.mxu0 0.0
  %1792 = vmatprep.subr.mxu0 0.0
  %1793 = vmatpush1.msra.mxu0 0.0
  %1794 = vmatprep.subr.mxu0 0.0
  %1795 = vmatpush1.msra.mxu0 0.0
  %1796 = vmatprep.subr.mxu0 0.0
  %1797 = vmatpush1.msra.mxu0 0.0
  %1798 = vmatprep.subr.mxu0 0.0
  %1799 = vmatpush1.msra.mxu0 0.0
  %1800 = vmatprep.subr.mxu0 0.0
  %1801 = vmatpush1.msra.mxu0 0.0
  %1802 = vmatprep.subr.mxu0 0.0
  %1803 = vmatpush1.msra.mxu0 0.0
  %1804 = vmatprep.subr.mxu0 0.0
  %1805 = vmatpush1.msra.mxu0 0.0
  %1806 = vmatprep.subr.mxu0 0.0
  %1807 = vmatpush1.msra.mxu0 0.0
  %1808 = vmatprep.subr.mxu0 0.0
  %1809 = vmatpush1.msra.mxu0 0.0
  %1810 = vmatprep.subr.mxu0 0.0
  %1811 = vmatpush1.msra.mxu0 0.0
  %1812 = vmatprep.mubr.f32.mxu0 0.0
  %v1813 = vand.u32 %v1154, 4294901760
  %1814 = vmatmul.mubr.f32.gmra.mrb[0].mxu0 %v1813
  %v1815 = vpop.f32.mrb[0].mxu0
  %v1816 = vadd.f32 %v1729, %v1815
  %v1817 = vpop.f32.mrb[0].mxu0
  %1818 = vdwg.mxu0
  %vm1819 = vcmask 23552
  %1820 = vst.msk [vmem:[%s7] sm:$0xff] %vm1819, %v1816
  // Predicated region
  $region30: #{tpu_custom_call.1} parent=0 // pred_check
    _
  $region31: #{tpu_custom_call.1} parent=0 // pred_check_branch
    %1822 = sbr.rel (0) target = $region33
  $region32: #{tpu_custom_call.1} parent=0 // pred_region
    _
  $region33: #{tpu_custom_call.1} parent=0 // pred_fallthru
    _
  // Predicated region
  $region34: #{tpu_custom_call.1} parent=0 // pred_check
    _
  $region35: #{tpu_custom_call.1} parent=0 // pred_check_branch
    %1824 = sbr.rel (0) target = $region37
  $region36: #{tpu_custom_call.1} parent=0 // pred_region
    _
  $region37: #{tpu_custom_call.1} parent=0 // pred_fallthru
    _

</llo_original>
